<compile_context>
chip_gen: v5e
topology: v5e:2x2
jax: 0.10.0
libtpu: 0.0.40
codegen_flags: <defaults>
</compile_context>

<pallas_src>
import functools
import math

import jax
import jax.numpy as jnp
from jax import lax
from jax.experimental import pallas as pl
from jax.experimental.pallas import tpu as pltpu


def mha_kernel(q_ref, k_ref, v_ref, mask_ref,
               wq_ref, bq_ref, wk_ref, bk_ref, wv_ref, bv_ref,
               wo_ref, bo_ref, gamma_ref, beta_ref,
               out_ref, attn_ref,
               *, n_head, d_k, d_v, scale):
    # Whole-sequence slabs for this batch element.
    Q = q_ref[0, :, :].astype(jnp.float32)            # (S, D)  (also residual)
    K = k_ref[0, :, :].astype(jnp.float32)            # (S, D)
    V = v_ref[0, :, :].astype(jnp.float32)            # (S, D)
    masked = mask_ref[0, :, :] != 0                   # (S, S) bool, True = masked

    # Input projections (weights resident in VMEM across the whole grid).
    # Fold the 1/sqrt(d_k) score scale into q (cheaper than scaling each (S,S)).
    q = (jnp.dot(Q, wq_ref[...], preferred_element_type=jnp.float32)
         + bq_ref[...]) * jnp.float32(scale)
    k = jnp.dot(K, wk_ref[...], preferred_element_type=jnp.float32) + bk_ref[...]
    v = jnp.dot(V, wv_ref[...], preferred_element_type=jnp.float32) + bv_ref[...]

    neg_inf = jnp.float32(-1e9)
    ctx_cols = []
    for h in range(n_head):                            # static loop over heads
        q_h = q[:, h * d_k:(h + 1) * d_k]              # (S, d_k) (scale included)
        k_h = k[:, h * d_k:(h + 1) * d_k]              # (S, d_k)
        v_h = v[:, h * d_v:(h + 1) * d_v]              # (S, d_v)

        scores = jnp.dot(q_h, k_h.T,
                         preferred_element_type=jnp.float32)          # (S, S)
        scores = jnp.where(masked, neg_inf, scores)

        m = jnp.max(scores, axis=-1, keepdims=True)
        e = jnp.exp(scores - m)
        attn = e / jnp.sum(e, axis=-1, keepdims=True)

        attn_ref[0, h, :, :] = attn.astype(attn_ref.dtype)
        ctx_cols.append(jnp.dot(attn, v_h, preferred_element_type=jnp.float32))

    context = jnp.concatenate(ctx_cols, axis=-1)       # (S, n_head * d_v)

    # Output projection + residual + LayerNorm (eps = 1e-5, PyTorch default).
    o = jnp.dot(context, wo_ref[...],
                preferred_element_type=jnp.float32) + bo_ref[...]
    x = o + Q
    mean = jnp.mean(x, axis=-1, keepdims=True)
    centered = x - mean
    var = jnp.mean(centered * centered, axis=-1, keepdims=True)
    y = centered * lax.rsqrt(var + 1e-5) * gamma_ref[...] + beta_ref[...]
    out_ref[0, :, :] = y.astype(out_ref.dtype)


def mha_forward(Q, K, V, attn_mask,
                wq, bq, wk, bk, wv, bv, wo, bo, gamma, beta,
                *, n_head, d_k, d_v):
    """Q/K/V: [B, S, d_model]; attn_mask: [B, S, S] bool (True = masked)."""
    B, S, D = Q.shape
    HK = n_head * d_k
    HV = n_head * d_v
    scale = 1.0 / math.sqrt(d_k)

    mask_i32 = attn_mask.astype(jnp.int32)
    bq2 = bq.reshape(1, HK)
    bk2 = bk.reshape(1, HK)
    bv2 = bv.reshape(1, HV)
    bo2 = bo.reshape(1, D)
    gamma2 = gamma.reshape(1, D)
    beta2 = beta.reshape(1, D)

    kernel = functools.partial(mha_kernel, n_head=n_head, d_k=d_k, d_v=d_v,
                               scale=scale)

    out, attn = pl.pallas_call(
        kernel,
        out_shape=(
            jax.ShapeDtypeStruct((B, S, D), jnp.float32),
            jax.ShapeDtypeStruct((B, n_head, S, S), jnp.float32),
        ),
        grid=(B,),
        in_specs=[
            # per-batch activation slabs
            pl.BlockSpec((1, S, D), lambda b: (b, 0, 0)),   # Q
            pl.BlockSpec((1, S, D), lambda b: (b, 0, 0)),   # K
            pl.BlockSpec((1, S, D), lambda b: (b, 0, 0)),   # V
            pl.BlockSpec((1, S, S), lambda b: (b, 0, 0)),   # mask
            # VMEM-resident parameters (same block every step)
            pl.BlockSpec((D, HK), lambda b: (0, 0)),        # Wq
            pl.BlockSpec((1, HK), lambda b: (0, 0)),        # bq
            pl.BlockSpec((D, HK), lambda b: (0, 0)),        # Wk
            pl.BlockSpec((1, HK), lambda b: (0, 0)),        # bk
            pl.BlockSpec((D, HV), lambda b: (0, 0)),        # Wv
            pl.BlockSpec((1, HV), lambda b: (0, 0)),        # bv
            pl.BlockSpec((HV, D), lambda b: (0, 0)),        # Wo
            pl.BlockSpec((1, D), lambda b: (0, 0)),         # bo
            pl.BlockSpec((1, D), lambda b: (0, 0)),         # gamma
            pl.BlockSpec((1, D), lambda b: (0, 0)),         # beta
        ],
        out_specs=(
            pl.BlockSpec((1, S, D), lambda b: (b, 0, 0)),
            pl.BlockSpec((1, n_head, S, S), lambda b: (b, 0, 0, 0)),
        ),
        compiler_params=pltpu.CompilerParams(
            dimension_semantics=("parallel",)),
    )(Q, K, V, mask_i32, wq, bq2, wk, bk2, wv, bv2, wo, bo2, gamma2, beta2)

    return out, attn


# Pure-JAX reference (mirrors the PyTorch forward) for a correctness check.
def mha_reference(Q, K, V, attn_mask,
                  wq, bq, wk, bk, wv, bv, wo, bo, gamma, beta,
                  *, n_head, d_k, d_v):
    B, S, D = Q.shape
    hp = lax.Precision.HIGHEST
    q = (jnp.matmul(Q, wq, precision=hp) + bq).reshape(B, S, n_head, d_k)
    k = (jnp.matmul(K, wk, precision=hp) + bk).reshape(B, S, n_head, d_k)
    v = (jnp.matmul(V, wv, precision=hp) + bv).reshape(B, S, n_head, d_v)
    q = q.transpose(0, 2, 1, 3)
    k = k.transpose(0, 2, 1, 3)
    v = v.transpose(0, 2, 1, 3)
    scores = jnp.einsum("bhqd,bhkd->bhqk", q, k, precision=hp) / math.sqrt(d_k)
    scores = jnp.where(attn_mask[:, None, :, :], -1e9, scores)
    attn = jax.nn.softmax(scores, axis=-1)
    ctx = jnp.einsum("bhqk,bhkd->bhqd", attn, v, precision=hp)
    ctx = ctx.transpose(0, 2, 1, 3).reshape(B, S, n_head * d_v)
    o = jnp.matmul(ctx, wo, precision=hp) + bo
    x = o + Q
    mean = jnp.mean(x, axis=-1, keepdims=True)
    var = jnp.mean((x - mean) ** 2, axis=-1, keepdims=True)
    out = (x - mean) * lax.rsqrt(var + 1e-5) * gamma + beta
    return out, attn


if __name__ == "__main__":
    # Small deterministic config consistent with the module's globals.
    batch = 2
    seq = 8
    d_model = 32
    n_head = 4
    d_k = 8
    d_v = 8

    key = jax.random.PRNGKey(0)
    ks = jax.random.split(key, 12)

    # Activations.
    Q = jax.random.normal(ks[0], (batch, seq, d_model), jnp.float32)
    K = jax.random.normal(ks[1], (batch, seq, d_model), jnp.float32)
    V = jax.random.normal(ks[2], (batch, seq, d_model), jnp.float32)

    # Causal mask (True = masked), shape [B, S, S] like the PyTorch attn_mask.
    causal = jnp.triu(jnp.ones((seq, seq), dtype=bool), k=1)
    attn_mask = jnp.broadcast_to(causal, (batch, seq, seq))

    # Linear weights stored in (in, out) layout (PyTorch weight transposed).
    sc = 0.1
    wq = sc * jax.random.normal(ks[3], (d_model, n_head * d_k), jnp.float32)
    bq = sc * jax.random.normal(ks[4], (n_head * d_k,), jnp.float32)
    wk = sc * jax.random.normal(ks[5], (d_model, n_head * d_k), jnp.float32)
    bk = sc * jax.random.normal(ks[6], (n_head * d_k,), jnp.float32)
    wv = sc * jax.random.normal(ks[7], (d_model, n_head * d_v), jnp.float32)
    bv = sc * jax.random.normal(ks[8], (n_head * d_v,), jnp.float32)
    wo = sc * jax.random.normal(ks[9], (n_head * d_v, d_model), jnp.float32)
    bo = sc * jax.random.normal(ks[10], (d_model,), jnp.float32)
    gamma = jnp.ones((d_model,), jnp.float32)   # nn.LayerNorm defaults
    beta = jnp.zeros((d_model,), jnp.float32)

    out, attn = mha_forward(Q, K, V, attn_mask,
                            wq, bq, wk, bk, wv, bv, wo, bo, gamma, beta,
                            n_head=n_head, d_k=d_k, d_v=d_v)
    out = jax.block_until_ready(out)
    attn = jax.block_until_ready(attn)

    ref_out, ref_attn = mha_reference(Q, K, V, attn_mask,
                                      wq, bq, wk, bk, wv, bv, wo, bo,
                                      gamma, beta,
                                      n_head=n_head, d_k=d_k, d_v=d_v)

    assert out.shape == (batch, seq, d_model)
    assert attn.shape == (batch, n_head, seq, seq)
    assert jnp.allclose(out, ref_out, atol=1e-3, rtol=1e-3), "output mismatch"
    assert jnp.allclose(attn, ref_attn, atol=1e-3, rtol=1e-3), "attn mismatch"

    print("KERNEL_OK")
</pallas_src>

<mosaic_0001>
module attributes {stable_mosaic.version = 11 : i64} {
  func.func @mha_kernel(%arg0: i32, %arg1: memref<1x8x32xf32, #tpu.memory_space<vmem>>, %arg2: memref<1x8x32xf32, #tpu.memory_space<vmem>>, %arg3: memref<1x8x32xf32, #tpu.memory_space<vmem>>, %arg4: memref<1x8x8xi32, #tpu.memory_space<vmem>>, %arg5: memref<32x32xf32, #tpu.memory_space<vmem>>, %arg6: memref<1x32xf32, #tpu.memory_space<vmem>>, %arg7: memref<32x32xf32, #tpu.memory_space<vmem>>, %arg8: memref<1x32xf32, #tpu.memory_space<vmem>>, %arg9: memref<32x32xf32, #tpu.memory_space<vmem>>, %arg10: memref<1x32xf32, #tpu.memory_space<vmem>>, %arg11: memref<32x32xf32, #tpu.memory_space<vmem>>, %arg12: memref<1x32xf32, #tpu.memory_space<vmem>>, %arg13: memref<1x32xf32, #tpu.memory_space<vmem>>, %arg14: memref<1x32xf32, #tpu.memory_space<vmem>>, %arg15: memref<1x8x32xf32, #tpu.memory_space<vmem>>, %arg16: memref<1x4x8x8xf32, #tpu.memory_space<vmem>>) attributes {dimension_semantics = [#tpu.dimension_semantics<parallel>], iteration_bounds = array<i64: 2>, scalar_prefetch = 0 : i64, scratch_operands = 0 : i64, tpu.core_type = #tpu.core_type<tc>, window_params = [{transform_indices = @transform_0, window_bounds = array<i64: 1, 8, 32>}, {transform_indices = @transform_1, window_bounds = array<i64: 1, 8, 32>}, {transform_indices = @transform_2, window_bounds = array<i64: 1, 8, 32>}, {transform_indices = @transform_3, window_bounds = array<i64: 1, 8, 8>}, {pipeline_mode = #tpu.pipeline_mode<synchronous>, transform_indices = @transform_4, window_bounds = array<i64: 32, 32>}, {pipeline_mode = #tpu.pipeline_mode<synchronous>, transform_indices = @transform_5, window_bounds = array<i64: 1, 32>}, {pipeline_mode = #tpu.pipeline_mode<synchronous>, transform_indices = @transform_6, window_bounds = array<i64: 32, 32>}, {pipeline_mode = #tpu.pipeline_mode<synchronous>, transform_indices = @transform_7, window_bounds = array<i64: 1, 32>}, {pipeline_mode = #tpu.pipeline_mode<synchronous>, transform_indices = @transform_8, window_bounds = array<i64: 32, 32>}, {pipeline_mode = #tpu.pipeline_mode<synchronous>, transform_indices = @transform_9, window_bounds = array<i64: 1, 32>}, {pipeline_mode = #tpu.pipeline_mode<synchronous>, transform_indices = @transform_10, window_bounds = array<i64: 32, 32>}, {pipeline_mode = #tpu.pipeline_mode<synchronous>, transform_indices = @transform_11, window_bounds = array<i64: 1, 32>}, {pipeline_mode = #tpu.pipeline_mode<synchronous>, transform_indices = @transform_12, window_bounds = array<i64: 1, 32>}, {pipeline_mode = #tpu.pipeline_mode<synchronous>, transform_indices = @transform_13, window_bounds = array<i64: 1, 32>}, {transform_indices = @transform_14, window_bounds = array<i64: 1, 8, 32>}, {transform_indices = @transform_15, window_bounds = array<i64: 1, 4, 8, 8>}]} {
    %c0 = arith.constant 0 : index
    %c0_0 = arith.constant 0 : index
    %c0_1 = arith.constant 0 : index
    %0 = vector.load %arg1[%c0, %c0_0, %c0_1] : memref<1x8x32xf32, #tpu.memory_space<vmem>>, vector<1x8x32xf32>
    %1 = vector.shape_cast %0 : vector<1x8x32xf32> to vector<8x32xf32>
    %c0_2 = arith.constant 0 : index
    %c0_3 = arith.constant 0 : index
    %c0_4 = arith.constant 0 : index
    %2 = vector.load %arg2[%c0_2, %c0_3, %c0_4] : memref<1x8x32xf32, #tpu.memory_space<vmem>>, vector<1x8x32xf32>
    %3 = vector.shape_cast %2 : vector<1x8x32xf32> to vector<8x32xf32>
    %c0_5 = arith.constant 0 : index
    %c0_6 = arith.constant 0 : index
    %c0_7 = arith.constant 0 : index
    %4 = vector.load %arg3[%c0_5, %c0_6, %c0_7] : memref<1x8x32xf32, #tpu.memory_space<vmem>>, vector<1x8x32xf32>
    %5 = vector.shape_cast %4 : vector<1x8x32xf32> to vector<8x32xf32>
    %c0_8 = arith.constant 0 : index
    %c0_9 = arith.constant 0 : index
    %c0_10 = arith.constant 0 : index
    %6 = vector.load %arg4[%c0_8, %c0_9, %c0_10] : memref<1x8x8xi32, #tpu.memory_space<vmem>>, vector<1x8x8xi32>
    %7 = vector.shape_cast %6 : vector<1x8x8xi32> to vector<8x8xi32>
    %c0_i32 = arith.constant 0 : i32
    %8 = vector.broadcast %c0_i32 : i32 to vector<8x8xi32>
    %9 = arith.cmpi ne, %7, %8 : vector<8x8xi32>
    %c0_11 = arith.constant 0 : index
    %c0_12 = arith.constant 0 : index
    %10 = vector.load %arg5[%c0_11, %c0_12] : memref<32x32xf32, #tpu.memory_space<vmem>>, vector<32x32xf32>
    %cst = arith.constant dense<0.000000e+00> : vector<8x32xf32>
    %11 = tpu.matmul %1, %10, %cst {dimension_numbers = #tpu.dot_dimension_numbers<[1], [0], [0], [1], [0, 0, 1, 1], [], []>} : vector<8x32xf32>, vector<32x32xf32>, vector<8x32xf32> -> vector<8x32xf32>
    %c0_13 = arith.constant 0 : index
    %c0_14 = arith.constant 0 : index
    %12 = vector.load %arg6[%c0_13, %c0_14] : memref<1x32xf32, #tpu.memory_space<vmem>>, vector<1x32xf32>
    %13 = vector.broadcast %12 : vector<1x32xf32> to vector<8x32xf32>
    %14 = arith.addf %11, %13 : vector<8x32xf32>
    %cst_15 = arith.constant 0.353553385 : f32
    %15 = vector.broadcast %cst_15 : f32 to vector<8x32xf32>
    %16 = arith.mulf %14, %15 : vector<8x32xf32>
    %c0_16 = arith.constant 0 : index
    %c0_17 = arith.constant 0 : index
    %17 = vector.load %arg7[%c0_16, %c0_17] : memref<32x32xf32, #tpu.memory_space<vmem>>, vector<32x32xf32>
    %cst_18 = arith.constant dense<0.000000e+00> : vector<8x32xf32>
    %18 = tpu.matmul %3, %17, %cst_18 {dimension_numbers = #tpu.dot_dimension_numbers<[1], [0], [0], [1], [0, 0, 1, 1], [], []>} : vector<8x32xf32>, vector<32x32xf32>, vector<8x32xf32> -> vector<8x32xf32>
    %c0_19 = arith.constant 0 : index
    %c0_20 = arith.constant 0 : index
    %19 = vector.load %arg8[%c0_19, %c0_20] : memref<1x32xf32, #tpu.memory_space<vmem>>, vector<1x32xf32>
    %20 = vector.broadcast %19 : vector<1x32xf32> to vector<8x32xf32>
    %21 = arith.addf %18, %20 : vector<8x32xf32>
    %c0_21 = arith.constant 0 : index
    %c0_22 = arith.constant 0 : index
    %22 = vector.load %arg9[%c0_21, %c0_22] : memref<32x32xf32, #tpu.memory_space<vmem>>, vector<32x32xf32>
    %cst_23 = arith.constant dense<0.000000e+00> : vector<8x32xf32>
    %23 = tpu.matmul %5, %22, %cst_23 {dimension_numbers = #tpu.dot_dimension_numbers<[1], [0], [0], [1], [0, 0, 1, 1], [], []>} : vector<8x32xf32>, vector<32x32xf32>, vector<8x32xf32> -> vector<8x32xf32>
    %c0_24 = arith.constant 0 : index
    %c0_25 = arith.constant 0 : index
    %24 = vector.load %arg10[%c0_24, %c0_25] : memref<1x32xf32, #tpu.memory_space<vmem>>, vector<1x32xf32>
    %25 = vector.broadcast %24 : vector<1x32xf32> to vector<8x32xf32>
    %26 = arith.addf %23, %25 : vector<8x32xf32>
    %27 = vector.extract_strided_slice %16 {offsets = [0, 0], sizes = [8, 8], strides = [1, 1]} : vector<8x32xf32> to vector<8x8xf32>
    %28 = vector.extract_strided_slice %21 {offsets = [0, 0], sizes = [8, 8], strides = [1, 1]} : vector<8x32xf32> to vector<8x8xf32>
    %29 = vector.extract_strided_slice %26 {offsets = [0, 0], sizes = [8, 8], strides = [1, 1]} : vector<8x32xf32> to vector<8x8xf32>
    %30 = tpu.transpose %28, [1, 0] : vector<8x8xf32> -> vector<8x8xf32>
    %cst_26 = arith.constant dense<0.000000e+00> : vector<8x8xf32>
    %31 = tpu.matmul %27, %30, %cst_26 {dimension_numbers = #tpu.dot_dimension_numbers<[1], [0], [0], [1], [0, 0, 1, 1], [], []>} : vector<8x8xf32>, vector<8x8xf32>, vector<8x8xf32> -> vector<8x8xf32>
    %cst_27 = arith.constant -1.000000e+09 : f32
    %32 = vector.broadcast %cst_27 : f32 to vector<8x8xf32>
    %33 = arith.select %9, %32, %31 : vector<8x8xi1>, vector<8x8xf32>
    %cst_28 = arith.constant dense<0xFF800000> : vector<8xf32>
    %34 = vector.multi_reduction <maximumf>, %33, %cst_28 [1] : vector<8x8xf32> to vector<8xf32>
    %35 = vector.shape_cast %34 : vector<8xf32> to vector<8x1xf32>
    %36 = vector.broadcast %35 : vector<8x1xf32> to vector<8x8xf32>
    %37 = arith.subf %33, %36 : vector<8x8xf32>
    %38 = math.exp %37 : vector<8x8xf32>
    %cst_29 = arith.constant dense<0.000000e+00> : vector<8xf32>
    %39 = vector.multi_reduction <add>, %38, %cst_29 [1] : vector<8x8xf32> to vector<8xf32>
    %40 = vector.shape_cast %39 : vector<8xf32> to vector<8x1xf32>
    %41 = vector.broadcast %40 : vector<8x1xf32> to vector<8x8xf32>
    %42 = arith.divf %38, %41 : vector<8x8xf32>
    %c0_30 = arith.constant 0 : index
    %c0_31 = arith.constant 0 : index
    %c0_32 = arith.constant 0 : index
    %c0_33 = arith.constant 0 : index
    %43 = vector.load %arg16[%c0_30, %c0_31, %c0_32, %c0_33] : memref<1x4x8x8xf32, #tpu.memory_space<vmem>>, vector<1x1x8x8xf32>
    %44 = vector.shape_cast %43 : vector<1x1x8x8xf32> to vector<8x8xf32>
    %45 = vector.shape_cast %42 : vector<8x8xf32> to vector<1x1x8x8xf32>
    tpu.vector_store %arg16[%c0_30, %c0_31, %c0_32, %c0_33], %45 {strides = array<i32>} : memref<1x4x8x8xf32, #tpu.memory_space<vmem>>, vector<1x1x8x8xf32>,
    %cst_34 = arith.constant dense<0.000000e+00> : vector<8x8xf32>
    %46 = tpu.matmul %42, %29, %cst_34 {dimension_numbers = #tpu.dot_dimension_numbers<[1], [0], [0], [1], [0, 0, 1, 1], [], []>} : vector<8x8xf32>, vector<8x8xf32>, vector<8x8xf32> -> vector<8x8xf32>
    %47 = vector.extract_strided_slice %16 {offsets = [0, 8], sizes = [8, 8], strides = [1, 1]} : vector<8x32xf32> to vector<8x8xf32>
    %48 = vector.extract_strided_slice %21 {offsets = [0, 8], sizes = [8, 8], strides = [1, 1]} : vector<8x32xf32> to vector<8x8xf32>
    %49 = vector.extract_strided_slice %26 {offsets = [0, 8], sizes = [8, 8], strides = [1, 1]} : vector<8x32xf32> to vector<8x8xf32>
    %50 = tpu.transpose %48, [1, 0] : vector<8x8xf32> -> vector<8x8xf32>
    %cst_35 = arith.constant dense<0.000000e+00> : vector<8x8xf32>
    %51 = tpu.matmul %47, %50, %cst_35 {dimension_numbers = #tpu.dot_dimension_numbers<[1], [0], [0], [1], [0, 0, 1, 1], [], []>} : vector<8x8xf32>, vector<8x8xf32>, vector<8x8xf32> -> vector<8x8xf32>
    %cst_36 = arith.constant -1.000000e+09 : f32
    %52 = vector.broadcast %cst_36 : f32 to vector<8x8xf32>
    %53 = arith.select %9, %52, %51 : vector<8x8xi1>, vector<8x8xf32>
    %cst_37 = arith.constant dense<0xFF800000> : vector<8xf32>
    %54 = vector.multi_reduction <maximumf>, %53, %cst_37 [1] : vector<8x8xf32> to vector<8xf32>
    %55 = vector.shape_cast %54 : vector<8xf32> to vector<8x1xf32>
    %56 = vector.broadcast %55 : vector<8x1xf32> to vector<8x8xf32>
    %57 = arith.subf %53, %56 : vector<8x8xf32>
    %58 = math.exp %57 : vector<8x8xf32>
    %cst_38 = arith.constant dense<0.000000e+00> : vector<8xf32>
    %59 = vector.multi_reduction <add>, %58, %cst_38 [1] : vector<8x8xf32> to vector<8xf32>
    %60 = vector.shape_cast %59 : vector<8xf32> to vector<8x1xf32>
    %61 = vector.broadcast %60 : vector<8x1xf32> to vector<8x8xf32>
    %62 = arith.divf %58, %61 : vector<8x8xf32>
    %c0_39 = arith.constant 0 : index
    %c1 = arith.constant 1 : index
    %c0_40 = arith.constant 0 : index
    %c0_41 = arith.constant 0 : index
    %63 = vector.load %arg16[%c0_39, %c1, %c0_40, %c0_41] : memref<1x4x8x8xf32, #tpu.memory_space<vmem>>, vector<1x1x8x8xf32>
    %64 = vector.shape_cast %63 : vector<1x1x8x8xf32> to vector<8x8xf32>
    %65 = vector.shape_cast %62 : vector<8x8xf32> to vector<1x1x8x8xf32>
    tpu.vector_store %arg16[%c0_39, %c1, %c0_40, %c0_41], %65 {strides = array<i32>} : memref<1x4x8x8xf32, #tpu.memory_space<vmem>>, vector<1x1x8x8xf32>,
    %cst_42 = arith.constant dense<0.000000e+00> : vector<8x8xf32>
    %66 = tpu.matmul %62, %49, %cst_42 {dimension_numbers = #tpu.dot_dimension_numbers<[1], [0], [0], [1], [0, 0, 1, 1], [], []>} : vector<8x8xf32>, vector<8x8xf32>, vector<8x8xf32> -> vector<8x8xf32>
    %67 = vector.extract_strided_slice %16 {offsets = [0, 16], sizes = [8, 8], strides = [1, 1]} : vector<8x32xf32> to vector<8x8xf32>
    %68 = vector.extract_strided_slice %21 {offsets = [0, 16], sizes = [8, 8], strides = [1, 1]} : vector<8x32xf32> to vector<8x8xf32>
    %69 = vector.extract_strided_slice %26 {offsets = [0, 16], sizes = [8, 8], strides = [1, 1]} : vector<8x32xf32> to vector<8x8xf32>
    %70 = tpu.transpose %68, [1, 0] : vector<8x8xf32> -> vector<8x8xf32>
    %cst_43 = arith.constant dense<0.000000e+00> : vector<8x8xf32>
    %71 = tpu.matmul %67, %70, %cst_43 {dimension_numbers = #tpu.dot_dimension_numbers<[1], [0], [0], [1], [0, 0, 1, 1], [], []>} : vector<8x8xf32>, vector<8x8xf32>, vector<8x8xf32> -> vector<8x8xf32>
    %cst_44 = arith.constant -1.000000e+09 : f32
    %72 = vector.broadcast %cst_44 : f32 to vector<8x8xf32>
    %73 = arith.select %9, %72, %71 : vector<8x8xi1>, vector<8x8xf32>
    %cst_45 = arith.constant dense<0xFF800000> : vector<8xf32>
    %74 = vector.multi_reduction <maximumf>, %73, %cst_45 [1] : vector<8x8xf32> to vector<8xf32>
    %75 = vector.shape_cast %74 : vector<8xf32> to vector<8x1xf32>
    %76 = vector.broadcast %75 : vector<8x1xf32> to vector<8x8xf32>
    %77 = arith.subf %73, %76 : vector<8x8xf32>
    %78 = math.exp %77 : vector<8x8xf32>
    %cst_46 = arith.constant dense<0.000000e+00> : vector<8xf32>
    %79 = vector.multi_reduction <add>, %78, %cst_46 [1] : vector<8x8xf32> to vector<8xf32>
    %80 = vector.shape_cast %79 : vector<8xf32> to vector<8x1xf32>
    %81 = vector.broadcast %80 : vector<8x1xf32> to vector<8x8xf32>
    %82 = arith.divf %78, %81 : vector<8x8xf32>
    %c0_47 = arith.constant 0 : index
    %c2 = arith.constant 2 : index
    %c0_48 = arith.constant 0 : index
    %c0_49 = arith.constant 0 : index
    %83 = vector.load %arg16[%c0_47, %c2, %c0_48, %c0_49] : memref<1x4x8x8xf32, #tpu.memory_space<vmem>>, vector<1x1x8x8xf32>
    %84 = vector.shape_cast %83 : vector<1x1x8x8xf32> to vector<8x8xf32>
    %85 = vector.shape_cast %82 : vector<8x8xf32> to vector<1x1x8x8xf32>
    tpu.vector_store %arg16[%c0_47, %c2, %c0_48, %c0_49], %85 {strides = array<i32>} : memref<1x4x8x8xf32, #tpu.memory_space<vmem>>, vector<1x1x8x8xf32>,
    %cst_50 = arith.constant dense<0.000000e+00> : vector<8x8xf32>
    %86 = tpu.matmul %82, %69, %cst_50 {dimension_numbers = #tpu.dot_dimension_numbers<[1], [0], [0], [1], [0, 0, 1, 1], [], []>} : vector<8x8xf32>, vector<8x8xf32>, vector<8x8xf32> -> vector<8x8xf32>
    %87 = vector.extract_strided_slice %16 {offsets = [0, 24], sizes = [8, 8], strides = [1, 1]} : vector<8x32xf32> to vector<8x8xf32>
    %88 = vector.extract_strided_slice %21 {offsets = [0, 24], sizes = [8, 8], strides = [1, 1]} : vector<8x32xf32> to vector<8x8xf32>
    %89 = vector.extract_strided_slice %26 {offsets = [0, 24], sizes = [8, 8], strides = [1, 1]} : vector<8x32xf32> to vector<8x8xf32>
    %90 = tpu.transpose %88, [1, 0] : vector<8x8xf32> -> vector<8x8xf32>
    %cst_51 = arith.constant dense<0.000000e+00> : vector<8x8xf32>
    %91 = tpu.matmul %87, %90, %cst_51 {dimension_numbers = #tpu.dot_dimension_numbers<[1], [0], [0], [1], [0, 0, 1, 1], [], []>} : vector<8x8xf32>, vector<8x8xf32>, vector<8x8xf32> -> vector<8x8xf32>
    %cst_52 = arith.constant -1.000000e+09 : f32
    %92 = vector.broadcast %cst_52 : f32 to vector<8x8xf32>
    %93 = arith.select %9, %92, %91 : vector<8x8xi1>, vector<8x8xf32>
    %cst_53 = arith.constant dense<0xFF800000> : vector<8xf32>
    %94 = vector.multi_reduction <maximumf>, %93, %cst_53 [1] : vector<8x8xf32> to vector<8xf32>
    %95 = vector.shape_cast %94 : vector<8xf32> to vector<8x1xf32>
    %96 = vector.broadcast %95 : vector<8x1xf32> to vector<8x8xf32>
    %97 = arith.subf %93, %96 : vector<8x8xf32>
    %98 = math.exp %97 : vector<8x8xf32>
    %cst_54 = arith.constant dense<0.000000e+00> : vector<8xf32>
    %99 = vector.multi_reduction <add>, %98, %cst_54 [1] : vector<8x8xf32> to vector<8xf32>
    %100 = vector.shape_cast %99 : vector<8xf32> to vector<8x1xf32>
    %101 = vector.broadcast %100 : vector<8x1xf32> to vector<8x8xf32>
    %102 = arith.divf %98, %101 : vector<8x8xf32>
    %c0_55 = arith.constant 0 : index
    %c3 = arith.constant 3 : index
    %c0_56 = arith.constant 0 : index
    %c0_57 = arith.constant 0 : index
    %103 = vector.load %arg16[%c0_55, %c3, %c0_56, %c0_57] : memref<1x4x8x8xf32, #tpu.memory_space<vmem>>, vector<1x1x8x8xf32>
    %104 = vector.shape_cast %103 : vector<1x1x8x8xf32> to vector<8x8xf32>
    %105 = vector.shape_cast %102 : vector<8x8xf32> to vector<1x1x8x8xf32>
    tpu.vector_store %arg16[%c0_55, %c3, %c0_56, %c0_57], %105 {strides = array<i32>} : memref<1x4x8x8xf32, #tpu.memory_space<vmem>>, vector<1x1x8x8xf32>,
    %cst_58 = arith.constant dense<0.000000e+00> : vector<8x8xf32>
    %106 = tpu.matmul %102, %89, %cst_58 {dimension_numbers = #tpu.dot_dimension_numbers<[1], [0], [0], [1], [0, 0, 1, 1], [], []>} : vector<8x8xf32>, vector<8x8xf32>, vector<8x8xf32> -> vector<8x8xf32>
    %107 = tpu.concatenate %46, %66, %86, %106 in 1 : vector<8x8xf32>, vector<8x8xf32>, vector<8x8xf32>, vector<8x8xf32> -> vector<8x32xf32>
    %c0_59 = arith.constant 0 : index
    %c0_60 = arith.constant 0 : index
    %108 = vector.load %arg11[%c0_59, %c0_60] : memref<32x32xf32, #tpu.memory_space<vmem>>, vector<32x32xf32>
    %cst_61 = arith.constant dense<0.000000e+00> : vector<8x32xf32>
    %109 = tpu.matmul %107, %108, %cst_61 {dimension_numbers = #tpu.dot_dimension_numbers<[1], [0], [0], [1], [0, 0, 1, 1], [], []>} : vector<8x32xf32>, vector<32x32xf32>, vector<8x32xf32> -> vector<8x32xf32>
    %c0_62 = arith.constant 0 : index
    %c0_63 = arith.constant 0 : index
    %110 = vector.load %arg12[%c0_62, %c0_63] : memref<1x32xf32, #tpu.memory_space<vmem>>, vector<1x32xf32>
    %111 = vector.broadcast %110 : vector<1x32xf32> to vector<8x32xf32>
    %112 = arith.addf %109, %111 : vector<8x32xf32>
    %113 = arith.addf %112, %1 : vector<8x32xf32>
    %cst_64 = arith.constant dense<0.000000e+00> : vector<8xf32>
    %114 = vector.multi_reduction <add>, %113, %cst_64 [1] : vector<8x32xf32> to vector<8xf32>
    %115 = vector.shape_cast %114 : vector<8xf32> to vector<8x1xf32>
    %cst_65 = arith.constant 3.200000e+01 : f32
    %116 = vector.broadcast %cst_65 : f32 to vector<8x1xf32>
    %117 = arith.divf %115, %116 : vector<8x1xf32>
    %118 = vector.broadcast %117 : vector<8x1xf32> to vector<8x32xf32>
    %119 = arith.subf %113, %118 : vector<8x32xf32>
    %120 = arith.mulf %119, %119 : vector<8x32xf32>
    %cst_66 = arith.constant dense<0.000000e+00> : vector<8xf32>
    %121 = vector.multi_reduction <add>, %120, %cst_66 [1] : vector<8x32xf32> to vector<8xf32>
    %122 = vector.shape_cast %121 : vector<8xf32> to vector<8x1xf32>
    %cst_67 = arith.constant 3.200000e+01 : f32
    %123 = vector.broadcast %cst_67 : f32 to vector<8x1xf32>
    %124 = arith.divf %122, %123 : vector<8x1xf32>
    %cst_68 = arith.constant 9.99999974E-6 : f32
    %125 = vector.broadcast %cst_68 : f32 to vector<8x1xf32>
    %126 = arith.addf %124, %125 : vector<8x1xf32>
    %127 = math.rsqrt %126 : vector<8x1xf32>
    %128 = vector.broadcast %127 : vector<8x1xf32> to vector<8x32xf32>
    %129 = arith.mulf %119, %128 : vector<8x32xf32>
    %c0_69 = arith.constant 0 : index
    %c0_70 = arith.constant 0 : index
    %130 = vector.load %arg13[%c0_69, %c0_70] : memref<1x32xf32, #tpu.memory_space<vmem>>, vector<1x32xf32>
    %131 = vector.broadcast %130 : vector<1x32xf32> to vector<8x32xf32>
    %132 = arith.mulf %129, %131 : vector<8x32xf32>
    %c0_71 = arith.constant 0 : index
    %c0_72 = arith.constant 0 : index
    %133 = vector.load %arg14[%c0_71, %c0_72] : memref<1x32xf32, #tpu.memory_space<vmem>>, vector<1x32xf32>
    %134 = vector.broadcast %133 : vector<1x32xf32> to vector<8x32xf32>
    %135 = arith.addf %132, %134 : vector<8x32xf32>
    %c0_73 = arith.constant 0 : index
    %c0_74 = arith.constant 0 : index
    %c0_75 = arith.constant 0 : index
    %136 = vector.load %arg15[%c0_73, %c0_74, %c0_75] : memref<1x8x32xf32, #tpu.memory_space<vmem>>, vector<1x8x32xf32>
    %137 = vector.shape_cast %136 : vector<1x8x32xf32> to vector<8x32xf32>
    %138 = vector.shape_cast %135 : vector<8x32xf32> to vector<1x8x32xf32>
    tpu.vector_store %arg15[%c0_73, %c0_74, %c0_75], %138 {strides = array<i32>} : memref<1x8x32xf32, #tpu.memory_space<vmem>>, vector<1x8x32xf32>,
    return
  }
  func.func @transform_0(%arg0: i32) -> (i32, i32, i32) {
    %c0_i32 = arith.constant 0 : i32
    %c0_i32_0 = arith.constant 0 : i32
    %c0_i32_1 = arith.constant 0 : i32
    return %arg0, %c0_i32, %c0_i32_0 : i32, i32, i32
  }
  func.func @transform_1(%arg0: i32) -> (i32, i32, i32) {
    %c0_i32 = arith.constant 0 : i32
    %c0_i32_0 = arith.constant 0 : i32
    %c0_i32_1 = arith.constant 0 : i32
    return %arg0, %c0_i32, %c0_i32_0 : i32, i32, i32
  }
  func.func @transform_2(%arg0: i32) -> (i32, i32, i32) {
    %c0_i32 = arith.constant 0 : i32
    %c0_i32_0 = arith.constant 0 : i32
    %c0_i32_1 = arith.constant 0 : i32
    return %arg0, %c0_i32, %c0_i32_0 : i32, i32, i32
  }
  func.func @transform_3(%arg0: i32) -> (i32, i32, i32) {
    %c0_i32 = arith.constant 0 : i32
    %c0_i32_0 = arith.constant 0 : i32
    %c0_i32_1 = arith.constant 0 : i32
    return %arg0, %c0_i32, %c0_i32_0 : i32, i32, i32
  }
  func.func @transform_4(%arg0: i32) -> (i32, i32) {
    %c0_i32 = arith.constant 0 : i32
    %c0_i32_0 = arith.constant 0 : i32
    %c0_i32_1 = arith.constant 0 : i32
    return %c0_i32, %c0_i32_0 : i32, i32
  }
  func.func @transform_5(%arg0: i32) -> (i32, i32) {
    %c0_i32 = arith.constant 0 : i32
    %c0_i32_0 = arith.constant 0 : i32
    %c0_i32_1 = arith.constant 0 : i32
    return %c0_i32, %c0_i32_0 : i32, i32
  }
  func.func @transform_6(%arg0: i32) -> (i32, i32) {
    %c0_i32 = arith.constant 0 : i32
    %c0_i32_0 = arith.constant 0 : i32
    %c0_i32_1 = arith.constant 0 : i32
    return %c0_i32, %c0_i32_0 : i32, i32
  }
  func.func @transform_7(%arg0: i32) -> (i32, i32) {
    %c0_i32 = arith.constant 0 : i32
    %c0_i32_0 = arith.constant 0 : i32
    %c0_i32_1 = arith.constant 0 : i32
    return %c0_i32, %c0_i32_0 : i32, i32
  }
  func.func @transform_8(%arg0: i32) -> (i32, i32) {
    %c0_i32 = arith.constant 0 : i32
    %c0_i32_0 = arith.constant 0 : i32
    %c0_i32_1 = arith.constant 0 : i32
    return %c0_i32, %c0_i32_0 : i32, i32
  }
  func.func @transform_9(%arg0: i32) -> (i32, i32) {
    %c0_i32 = arith.constant 0 : i32
    %c0_i32_0 = arith.constant 0 : i32
    %c0_i32_1 = arith.constant 0 : i32
    return %c0_i32, %c0_i32_0 : i32, i32
  }
  func.func @transform_10(%arg0: i32) -> (i32, i32) {
    %c0_i32 = arith.constant 0 : i32
    %c0_i32_0 = arith.constant 0 : i32
    %c0_i32_1 = arith.constant 0 : i32
    return %c0_i32, %c0_i32_0 : i32, i32
  }
  func.func @transform_11(%arg0: i32) -> (i32, i32) {
    %c0_i32 = arith.constant 0 : i32
    %c0_i32_0 = arith.constant 0 : i32
    %c0_i32_1 = arith.constant 0 : i32
    return %c0_i32, %c0_i32_0 : i32, i32
  }
  func.func @transform_12(%arg0: i32) -> (i32, i32) {
    %c0_i32 = arith.constant 0 : i32
    %c0_i32_0 = arith.constant 0 : i32
    %c0_i32_1 = arith.constant 0 : i32
    return %c0_i32, %c0_i32_0 : i32, i32
  }
  func.func @transform_13(%arg0: i32) -> (i32, i32) {
    %c0_i32 = arith.constant 0 : i32
    %c0_i32_0 = arith.constant 0 : i32
    %c0_i32_1 = arith.constant 0 : i32
    return %c0_i32, %c0_i32_0 : i32, i32
  }
  func.func @transform_14(%arg0: i32) -> (i32, i32, i32) {
    %c0_i32 = arith.constant 0 : i32
    %c0_i32_0 = arith.constant 0 : i32
    %c0_i32_1 = arith.constant 0 : i32
    return %arg0, %c0_i32, %c0_i32_0 : i32, i32, i32
  }
  func.func @transform_15(%arg0: i32) -> (i32, i32, i32, i32) {
    %c0_i32 = arith.constant 0 : i32
    %c0_i32_0 = arith.constant 0 : i32
    %c0_i32_1 = arith.constant 0 : i32
    %c0_i32_2 = arith.constant 0 : i32
    return %arg0, %c0_i32, %c0_i32_0, %c0_i32_1 : i32, i32, i32, i32
  }
}

</mosaic_0001>

<llo_original>
// kernel: tpu_custom_call.1
$region0: #{tpu_custom_call.1}
  #allocation0 [shape = 'u32[]', space=smem, size = 0x4, offset = 0x4, fixed_abs, tag = 'smem constant byte address 0x4 - core index']
  #allocation1 [shape = 'u32[72,128]{1,0:T(1,128)}', space=vmem, size = 0x9000, scoped, tag = 'internal scratch']
  %s0 = inlined_call_operand.hbm [shape: f32[2,8,32], index: 0, kind: input, shape index: {}]
  %s1 = inlined_call_operand.hbm [shape: f32[2,8,32], index: 1, kind: input, shape index: {}]
  %s2 = inlined_call_operand.hbm [shape: f32[2,8,32], index: 2, kind: input, shape index: {}]
  %s3 = inlined_call_operand.hbm [shape: s32[2,8,8], index: 3, kind: input, shape index: {}]
  %s4 = inlined_call_operand.hbm [shape: f32[32,32], index: 4, kind: input, shape index: {}]
  %s5 = inlined_call_operand.vmem [shape: f32[1,32], index: 5, kind: input, shape index: {}]
  %s6 = inlined_call_operand.hbm [shape: f32[32,32], index: 6, kind: input, shape index: {}]
  %s7 = inlined_call_operand.vmem [shape: f32[1,32], index: 7, kind: input, shape index: {}]
  %s8 = inlined_call_operand.hbm [shape: f32[32,32], index: 8, kind: input, shape index: {}]
  %s9 = inlined_call_operand.vmem [shape: f32[1,32], index: 9, kind: input, shape index: {}]
  %s10 = inlined_call_operand.hbm [shape: f32[32,32], index: 10, kind: input, shape index: {}]
  %s11 = inlined_call_operand.vmem [shape: f32[1,32], index: 11, kind: input, shape index: {}]
  %s12 = inlined_call_operand.vmem [shape: f32[1,32], index: 12, kind: input, shape index: {}]
  %s13 = inlined_call_operand.vmem [shape: f32[1,32], index: 13, kind: input, shape index: {}]
  %s14 = inlined_call_operand.hbm [shape: f32[2,8,32], index: 14, kind: output, shape index: {0}]
  %s15 = inlined_call_operand.hbm [shape: f32[2,4,8,8], index: 15, kind: output, shape index: {1}]
  %16 = xla_tuple %s14, %s15
  %s17 = sld [smem:[#allocation0]]
  $region129: #{tpu_custom_call.1} parent=0
    _
  %s19 = ssub.s32 1, %s17
  %s20 = scalar_select 0, %s19, %s17
  $region1: #{tpu_custom_call.1} parent=0
    #allocation2 [shape = 'u8[8192]{0}', space=vmem, size = 0x2000, scoped, tag = 'input window, operand 0']
    #allocation3 [shape = 's32[2]{0}', space=sflag, size = 0x8, scoped, tag = 'scoped memory for tpu_custom_call.1']
    #allocation4 [shape = 's32[2]{0}', space=sflag, size = 0x8, scoped, tag = 'scoped memory for tpu_custom_call.1']
    #allocation5 [shape = 'u8[8192]{0}', space=vmem, size = 0x2000, scoped, tag = 'input window, operand 1']
    #allocation6 [shape = 's32[2]{0}', space=sflag, size = 0x8, scoped, tag = 'scoped memory for tpu_custom_call.1']
    #allocation7 [shape = 'u8[8192]{0}', space=vmem, size = 0x2000, scoped, tag = 'input window, operand 2']
    #allocation8 [shape = 'u8[8192]{0}', space=vmem, size = 0x2000, scoped, tag = 'input window, operand 3']
    #allocation9 [shape = 's32[2]{0}', space=sflag, size = 0x8, scoped, tag = 'scoped memory for tpu_custom_call.1']
    #allocation10 [shape = 'u8[16384]{0}', space=vmem, size = 0x4000, scoped, tag = 'input window, operand 4, single buffered']
    #allocation11 [shape = 'u8[16384]{0}', space=vmem, size = 0x4000, scoped, tag = 'input window, operand 6, single buffered']
    #allocation12 [shape = 's32[1]{0}', space=sflag, size = 0x4, scoped, tag = 'scoped memory for tpu_custom_call.1']
    #allocation13 [shape = 'u8[16384]{0}', space=vmem, size = 0x4000, scoped, tag = 'input window, operand 8, single buffered']
    #allocation14 [shape = 'u8[16384]{0}', space=vmem, size = 0x4000, scoped, tag = 'input window, operand 10, single buffered']
    #allocation15 [shape = 's32[1]{0}', space=sflag, size = 0x4, scoped, tag = 'scoped memory for tpu_custom_call.1']
    #allocation16 [shape = 'u8[8192]{0}', space=vmem, size = 0x2000, scoped, tag = 'output window, operand 0']
    #allocation17 [shape = 'u8[32768]{0}', space=vmem, size = 0x8000, scoped, tag = 'output window, operand 1']
    #allocation18 [shape = 's32[2]{0}', space=sflag, size = 0x8, scoped, tag = 'scoped memory for tpu_custom_call.1']
    %21 = vsyncpa [#allocation3], 0
    %s22 = scalar_lea.sflag [#allocation3], 1
    %23 = vsyncpa %s22, 0
    %24 = vsyncpa [#allocation6], 0
    %s25 = scalar_lea.sflag [#allocation6], 1
    %26 = vsyncpa %s25, 0
    %27 = vsyncpa [#allocation9], 0
    %s28 = scalar_lea.sflag [#allocation9], 1
    %29 = vsyncpa %s28, 0
    %30 = vsyncpa [#allocation12], 0
    %31 = vsyncpa [#allocation15], 0
    %32 = vsyncpa [#allocation4], 0
    %s33 = scalar_lea.sflag [#allocation4], 1
    %34 = vsyncpa %s33, 0
    %35 = vsyncpa [#allocation18], 0
    %s36 = scalar_lea.sflag [#allocation18], 1
    %37 = vsyncpa %s36, 0
    loop: start=0, step=1, limit=4
    $region2: #{tpu_custom_call.1} parent=1 // loop_pre_header
      _
    $region3: #{tpu_custom_call.1} parent=1 // loop_header
      %s39 = sphi 0, %s43
      %p40 = scmp.ge.s32.totalorder %s39, 4
      %s49 = sphi 0, %s51
      %s52 = sphi 0, %s49
      %s53 = sphi 0, %s52
      %s69 = sphi 0, %s53
      %s75 = sphi 0, %s77
      %s78 = sphi 0, %s75
      %s79 = sphi 0, %s78
      %s95 = sphi 0, %s79
      %s101 = sphi 0, %s103
      %s104 = sphi 0, %s101
      %s105 = sphi 0, %s104
      %s121 = sphi 0, %s105
      %s127 = sphi 0, %s129
      %s130 = sphi 0, %s127
      %s131 = sphi 0, %s130
      %s147 = sphi 0, %s131
      %s151 = sphi 0, %s151
      %s153 = sphi 0, %s151
      %s154 = sphi 0, %s153
      %s168 = sphi 0, %s154
      %s172 = sphi 0, %s172
      %s174 = sphi 0, %s172
      %s175 = sphi 0, %s174
      %s189 = sphi 0, %s175
      %s193 = sphi 0, %s193
      %s195 = sphi 0, %s193
      %s196 = sphi 0, %s195
      %s210 = sphi 0, %s196
      %s214 = sphi 0, %s214
      %s216 = sphi 0, %s214
      %s217 = sphi 0, %s216
      %s231 = sphi 0, %s217
      %s235 = sphi 0, %s235
      %s237 = sphi 0, %s235
      %s238 = sphi 0, %s237
      %s252 = sphi 0, %s238
      %s256 = sphi 0, %s256
      %s258 = sphi 0, %s256
      %s259 = sphi 0, %s258
      %s273 = sphi 0, %s259
      %s277 = sphi 0, %s277
      %s279 = sphi 0, %s277
      %s280 = sphi 0, %s279
      %s294 = sphi 0, %s280
      %s298 = sphi 0, %s298
      %s300 = sphi 0, %s298
      %s301 = sphi 0, %s300
      %s315 = sphi 0, %s301
      %s319 = sphi 0, %s319
      %s321 = sphi 0, %s319
      %s322 = sphi 0, %s321
      %s336 = sphi 0, %s322
      %s340 = sphi 0, %s340
      %s342 = sphi 0, %s340
      %s343 = sphi 0, %s342
      %s357 = sphi 0, %s343
      %s363 = sphi 0, %s365
      %s366 = sphi 0, %s363
      %s367 = sphi 0, %s366
      %s383 = sphi 0, %s367
      %s389 = sphi 0, %s391
      %s392 = sphi 0, %s389
      %s393 = sphi 0, %s392
      %s409 = sphi 0, %s393
    $region4: #{tpu_custom_call.1} parent=1 // loop_header_branch
      %42 = sbr.rel (%p40) target = $region8
    $region5: #{tpu_custom_call.1} parent=1 // loop_body
      %s44 = ssub.s32 %s39, 1
      %s45 = ssub.s32 %s39, 2
      %s46 = sadd.s32 %s39, 1
      %s47 = ssub.s32 %s39, %s46
      %p48 = scmp.eq.s32.totalorder %s47, 0
      %s50 = sadd.s32 %s49, 1
      %s51 = scalar_select %p48, %s49, %s50
      %p54 = pneg %p48
      %p55 = scmp.eq.s32.totalorder %s39, 1
      %p56 = por %p54, %p55
      %p57 = scmp.ne.s32.totalorder %s49, %s52
      %p58 = scmp.eq.s32.totalorder %s39, 0
      %p59 = por %p57, %p58
      %p60 = scmp.ne.s32.totalorder %s49, %s52
      %p61 = scmp.eq.s32.totalorder %s44, 1
      %p62 = por %p60, %p61
      %p63 = scmp.ne.s32.totalorder %s52, %s53
      %p64 = scmp.eq.s32.totalorder %s44, 0
      %p65 = por %p63, %p64
      %p66 = scmp.ne.s32.totalorder %s52, %s53
      %p67 = scmp.eq.s32.totalorder %s45, 1
      %p68 = por %p66, %p67
      %p70 = scmp.ne.s32.totalorder %s53, %s69
      %p71 = scmp.eq.s32.totalorder %s45, 0
      %p72 = por %p70, %p71
      %s73 = ssub.s32 %s39, %s46
      %p74 = scmp.eq.s32.totalorder %s73, 0
      %s76 = sadd.s32 %s75, 1
      %s77 = scalar_select %p74, %s75, %s76
      %p80 = pneg %p74
      %p81 = scmp.eq.s32.totalorder %s39, 1
      %p82 = por %p80, %p81
      %p83 = scmp.ne.s32.totalorder %s75, %s78
      %p84 = scmp.eq.s32.totalorder %s39, 0
      %p85 = por %p83, %p84
      %p86 = scmp.ne.s32.totalorder %s75, %s78
      %p87 = scmp.eq.s32.totalorder %s44, 1
      %p88 = por %p86, %p87
      %p89 = scmp.ne.s32.totalorder %s78, %s79
      %p90 = scmp.eq.s32.totalorder %s44, 0
      %p91 = por %p89, %p90
      %p92 = scmp.ne.s32.totalorder %s78, %s79
      %p93 = scmp.eq.s32.totalorder %s45, 1
      %p94 = por %p92, %p93
      %p96 = scmp.ne.s32.totalorder %s79, %s95
      %p97 = scmp.eq.s32.totalorder %s45, 0
      %p98 = por %p96, %p97
      %s99 = ssub.s32 %s39, %s46
      %p100 = scmp.eq.s32.totalorder %s99, 0
      %s102 = sadd.s32 %s101, 1
      %s103 = scalar_select %p100, %s101, %s102
      %p106 = pneg %p100
      %p107 = scmp.eq.s32.totalorder %s39, 1
      %p108 = por %p106, %p107
      %p109 = scmp.ne.s32.totalorder %s101, %s104
      %p110 = scmp.eq.s32.totalorder %s39, 0
      %p111 = por %p109, %p110
      %p112 = scmp.ne.s32.totalorder %s101, %s104
      %p113 = scmp.eq.s32.totalorder %s44, 1
      %p114 = por %p112, %p113
      %p115 = scmp.ne.s32.totalorder %s104, %s105
      %p116 = scmp.eq.s32.totalorder %s44, 0
      %p117 = por %p115, %p116
      %p118 = scmp.ne.s32.totalorder %s104, %s105
      %p119 = scmp.eq.s32.totalorder %s45, 1
      %p120 = por %p118, %p119
      %p122 = scmp.ne.s32.totalorder %s105, %s121
      %p123 = scmp.eq.s32.totalorder %s45, 0
      %p124 = por %p122, %p123
      %s125 = ssub.s32 %s39, %s46
      %p126 = scmp.eq.s32.totalorder %s125, 0
      %s128 = sadd.s32 %s127, 1
      %s129 = scalar_select %p126, %s127, %s128
      %p132 = pneg %p126
      %p133 = scmp.eq.s32.totalorder %s39, 1
      %p134 = por %p132, %p133
      %p135 = scmp.ne.s32.totalorder %s127, %s130
      %p136 = scmp.eq.s32.totalorder %s39, 0
      %p137 = por %p135, %p136
      %p138 = scmp.ne.s32.totalorder %s127, %s130
      %p139 = scmp.eq.s32.totalorder %s44, 1
      %p140 = por %p138, %p139
      %p141 = scmp.ne.s32.totalorder %s130, %s131
      %p142 = scmp.eq.s32.totalorder %s44, 0
      %p143 = por %p141, %p142
      %p144 = scmp.ne.s32.totalorder %s130, %s131
      %p145 = scmp.eq.s32.totalorder %s45, 1
      %p146 = por %p144, %p145
      %p148 = scmp.ne.s32.totalorder %s131, %s147
      %p149 = scmp.eq.s32.totalorder %s45, 0
      %p150 = por %p148, %p149
      %s152 = sadd.s32 %s151, 1
      %p155 = scmp.eq.s32.totalorder %s39, 1
      %p156 = scmp.ne.s32.totalorder %s151, %s153
      %p157 = scmp.eq.s32.totalorder %s39, 0
      %p158 = por %p156, %p157
      %p159 = scmp.ne.s32.totalorder %s151, %s153
      %p160 = scmp.eq.s32.totalorder %s44, 1
      %p161 = por %p159, %p160
      %p162 = scmp.ne.s32.totalorder %s153, %s154
      %p163 = scmp.eq.s32.totalorder %s44, 0
      %p164 = por %p162, %p163
      %p165 = scmp.ne.s32.totalorder %s153, %s154
      %p166 = scmp.eq.s32.totalorder %s45, 1
      %p167 = por %p165, %p166
      %p169 = scmp.ne.s32.totalorder %s154, %s168
      %p170 = scmp.eq.s32.totalorder %s45, 0
      %p171 = por %p169, %p170
      %s173 = sadd.s32 %s172, 1
      %p176 = scmp.eq.s32.totalorder %s39, 1
      %p177 = scmp.ne.s32.totalorder %s172, %s174
      %p178 = scmp.eq.s32.totalorder %s39, 0
      %p179 = por %p177, %p178
      %p180 = scmp.ne.s32.totalorder %s172, %s174
      %p181 = scmp.eq.s32.totalorder %s44, 1
      %p182 = por %p180, %p181
      %p183 = scmp.ne.s32.totalorder %s174, %s175
      %p184 = scmp.eq.s32.totalorder %s44, 0
      %p185 = por %p183, %p184
      %p186 = scmp.ne.s32.totalorder %s174, %s175
      %p187 = scmp.eq.s32.totalorder %s45, 1
      %p188 = por %p186, %p187
      %p190 = scmp.ne.s32.totalorder %s175, %s189
      %p191 = scmp.eq.s32.totalorder %s45, 0
      %p192 = por %p190, %p191
      %s194 = sadd.s32 %s193, 1
      %p197 = scmp.eq.s32.totalorder %s39, 1
      %p198 = scmp.ne.s32.totalorder %s193, %s195
      %p199 = scmp.eq.s32.totalorder %s39, 0
      %p200 = por %p198, %p199
      %p201 = scmp.ne.s32.totalorder %s193, %s195
      %p202 = scmp.eq.s32.totalorder %s44, 1
      %p203 = por %p201, %p202
      %p204 = scmp.ne.s32.totalorder %s195, %s196
      %p205 = scmp.eq.s32.totalorder %s44, 0
      %p206 = por %p204, %p205
      %p207 = scmp.ne.s32.totalorder %s195, %s196
      %p208 = scmp.eq.s32.totalorder %s45, 1
      %p209 = por %p207, %p208
      %p211 = scmp.ne.s32.totalorder %s196, %s210
      %p212 = scmp.eq.s32.totalorder %s45, 0
      %p213 = por %p211, %p212
      %s215 = sadd.s32 %s214, 1
      %p218 = scmp.eq.s32.totalorder %s39, 1
      %p219 = scmp.ne.s32.totalorder %s214, %s216
      %p220 = scmp.eq.s32.totalorder %s39, 0
      %p221 = por %p219, %p220
      %p222 = scmp.ne.s32.totalorder %s214, %s216
      %p223 = scmp.eq.s32.totalorder %s44, 1
      %p224 = por %p222, %p223
      %p225 = scmp.ne.s32.totalorder %s216, %s217
      %p226 = scmp.eq.s32.totalorder %s44, 0
      %p227 = por %p225, %p226
      %p228 = scmp.ne.s32.totalorder %s216, %s217
      %p229 = scmp.eq.s32.totalorder %s45, 1
      %p230 = por %p228, %p229
      %p232 = scmp.ne.s32.totalorder %s217, %s231
      %p233 = scmp.eq.s32.totalorder %s45, 0
      %p234 = por %p232, %p233
      %s236 = sadd.s32 %s235, 1
      %p239 = scmp.eq.s32.totalorder %s39, 1
      %p240 = scmp.ne.s32.totalorder %s235, %s237
      %p241 = scmp.eq.s32.totalorder %s39, 0
      %p242 = por %p240, %p241
      %p243 = scmp.ne.s32.totalorder %s235, %s237
      %p244 = scmp.eq.s32.totalorder %s44, 1
      %p245 = por %p243, %p244
      %p246 = scmp.ne.s32.totalorder %s237, %s238
      %p247 = scmp.eq.s32.totalorder %s44, 0
      %p248 = por %p246, %p247
      %p249 = scmp.ne.s32.totalorder %s237, %s238
      %p250 = scmp.eq.s32.totalorder %s45, 1
      %p251 = por %p249, %p250
      %p253 = scmp.ne.s32.totalorder %s238, %s252
      %p254 = scmp.eq.s32.totalorder %s45, 0
      %p255 = por %p253, %p254
      %s257 = sadd.s32 %s256, 1
      %p260 = scmp.eq.s32.totalorder %s39, 1
      %p261 = scmp.ne.s32.totalorder %s256, %s258
      %p262 = scmp.eq.s32.totalorder %s39, 0
      %p263 = por %p261, %p262
      %p264 = scmp.ne.s32.totalorder %s256, %s258
      %p265 = scmp.eq.s32.totalorder %s44, 1
      %p266 = por %p264, %p265
      %p267 = scmp.ne.s32.totalorder %s258, %s259
      %p268 = scmp.eq.s32.totalorder %s44, 0
      %p269 = por %p267, %p268
      %p270 = scmp.ne.s32.totalorder %s258, %s259
      %p271 = scmp.eq.s32.totalorder %s45, 1
      %p272 = por %p270, %p271
      %p274 = scmp.ne.s32.totalorder %s259, %s273
      %p275 = scmp.eq.s32.totalorder %s45, 0
      %p276 = por %p274, %p275
      %s278 = sadd.s32 %s277, 1
      %p281 = scmp.eq.s32.totalorder %s39, 1
      %p282 = scmp.ne.s32.totalorder %s277, %s279
      %p283 = scmp.eq.s32.totalorder %s39, 0
      %p284 = por %p282, %p283
      %p285 = scmp.ne.s32.totalorder %s277, %s279
      %p286 = scmp.eq.s32.totalorder %s44, 1
      %p287 = por %p285, %p286
      %p288 = scmp.ne.s32.totalorder %s279, %s280
      %p289 = scmp.eq.s32.totalorder %s44, 0
      %p290 = por %p288, %p289
      %p291 = scmp.ne.s32.totalorder %s279, %s280
      %p292 = scmp.eq.s32.totalorder %s45, 1
      %p293 = por %p291, %p292
      %p295 = scmp.ne.s32.totalorder %s280, %s294
      %p296 = scmp.eq.s32.totalorder %s45, 0
      %p297 = por %p295, %p296
      %s299 = sadd.s32 %s298, 1
      %p302 = scmp.eq.s32.totalorder %s39, 1
      %p303 = scmp.ne.s32.totalorder %s298, %s300
      %p304 = scmp.eq.s32.totalorder %s39, 0
      %p305 = por %p303, %p304
      %p306 = scmp.ne.s32.totalorder %s298, %s300
      %p307 = scmp.eq.s32.totalorder %s44, 1
      %p308 = por %p306, %p307
      %p309 = scmp.ne.s32.totalorder %s300, %s301
      %p310 = scmp.eq.s32.totalorder %s44, 0
      %p311 = por %p309, %p310
      %p312 = scmp.ne.s32.totalorder %s300, %s301
      %p313 = scmp.eq.s32.totalorder %s45, 1
      %p314 = por %p312, %p313
      %p316 = scmp.ne.s32.totalorder %s301, %s315
      %p317 = scmp.eq.s32.totalorder %s45, 0
      %p318 = por %p316, %p317
      %s320 = sadd.s32 %s319, 1
      %p323 = scmp.eq.s32.totalorder %s39, 1
      %p324 = scmp.ne.s32.totalorder %s319, %s321
      %p325 = scmp.eq.s32.totalorder %s39, 0
      %p326 = por %p324, %p325
      %p327 = scmp.ne.s32.totalorder %s319, %s321
      %p328 = scmp.eq.s32.totalorder %s44, 1
      %p329 = por %p327, %p328
      %p330 = scmp.ne.s32.totalorder %s321, %s322
      %p331 = scmp.eq.s32.totalorder %s44, 0
      %p332 = por %p330, %p331
      %p333 = scmp.ne.s32.totalorder %s321, %s322
      %p334 = scmp.eq.s32.totalorder %s45, 1
      %p335 = por %p333, %p334
      %p337 = scmp.ne.s32.totalorder %s322, %s336
      %p338 = scmp.eq.s32.totalorder %s45, 0
      %p339 = por %p337, %p338
      %s341 = sadd.s32 %s340, 1
      %p344 = scmp.eq.s32.totalorder %s39, 1
      %p345 = scmp.ne.s32.totalorder %s340, %s342
      %p346 = scmp.eq.s32.totalorder %s39, 0
      %p347 = por %p345, %p346
      %p348 = scmp.ne.s32.totalorder %s340, %s342
      %p349 = scmp.eq.s32.totalorder %s44, 1
      %p350 = por %p348, %p349
      %p351 = scmp.ne.s32.totalorder %s342, %s343
      %p352 = scmp.eq.s32.totalorder %s44, 0
      %p353 = por %p351, %p352
      %p354 = scmp.ne.s32.totalorder %s342, %s343
      %p355 = scmp.eq.s32.totalorder %s45, 1
      %p356 = por %p354, %p355
      %p358 = scmp.ne.s32.totalorder %s343, %s357
      %p359 = scmp.eq.s32.totalorder %s45, 0
      %p360 = por %p358, %p359
      %s361 = ssub.s32 %s39, %s46
      %p362 = scmp.eq.s32.totalorder %s361, 0
      %s364 = sadd.s32 %s363, 1
      %s365 = scalar_select %p362, %s363, %s364
      %p368 = pneg %p362
      %p369 = scmp.eq.s32.totalorder %s39, 1
      %p370 = por %p368, %p369
      %p371 = scmp.ne.s32.totalorder %s363, %s366
      %p372 = scmp.eq.s32.totalorder %s39, 0
      %p373 = por %p371, %p372
      %p374 = scmp.ne.s32.totalorder %s363, %s366
      %p375 = scmp.eq.s32.totalorder %s44, 1
      %p376 = por %p374, %p375
      %p377 = scmp.ne.s32.totalorder %s366, %s367
      %p378 = scmp.eq.s32.totalorder %s44, 0
      %p379 = por %p377, %p378
      %p380 = scmp.ne.s32.totalorder %s366, %s367
      %p381 = scmp.eq.s32.totalorder %s45, 1
      %p382 = por %p380, %p381
      %p384 = scmp.ne.s32.totalorder %s367, %s383
      %p385 = scmp.eq.s32.totalorder %s45, 0
      %p386 = por %p384, %p385
      %s387 = ssub.s32 %s39, %s46
      %p388 = scmp.eq.s32.totalorder %s387, 0
      %s390 = sadd.s32 %s389, 1
      %s391 = scalar_select %p388, %s389, %s390
      %p394 = pneg %p388
      %p395 = scmp.eq.s32.totalorder %s39, 1
      %p396 = por %p394, %p395
      %p397 = scmp.ne.s32.totalorder %s389, %s392
      %p398 = scmp.eq.s32.totalorder %s39, 0
      %p399 = por %p397, %p398
      %p400 = scmp.ne.s32.totalorder %s389, %s392
      %p401 = scmp.eq.s32.totalorder %s44, 1
      %p402 = por %p400, %p401
      %p403 = scmp.ne.s32.totalorder %s392, %s393
      %p404 = scmp.eq.s32.totalorder %s44, 0
      %p405 = por %p403, %p404
      %p406 = scmp.ne.s32.totalorder %s392, %s393
      %p407 = scmp.eq.s32.totalorder %s45, 1
      %p408 = por %p406, %p407
      %p410 = scmp.ne.s32.totalorder %s393, %s409
      %p411 = scmp.eq.s32.totalorder %s45, 0
      %p412 = por %p410, %p411
      %p413 = scmp.le.s32.totalorder 1, %s39
      %p414 = scmp.lt.s32.totalorder %s39, 3
      %p415 = pnand %p413, %p414
      %p416 = pneg %p415
      // Predicated region
      $region9: #{tpu_custom_call.1} parent=5 // pred_check
        _
      $region10: #{tpu_custom_call.1} parent=5 // pred_check_branch
        %418 = sbr.rel (%p415) target = $region12
      $region11: #{tpu_custom_call.1} parent=5 // pred_region
        %s419 = ssub.s32 %s39, 1
        // Predicated region
        $region13: #{tpu_custom_call.1} parent=11 // pred_check
          %p420 = pneg %p164
        $region14: #{tpu_custom_call.1} parent=11 // pred_check_branch
          %422 = sbr.rel (%p420) target = $region16
        $region15: #{tpu_custom_call.1} parent=11 // pred_region
          %424 = vsyncadd [#allocation9], 0
          %s425 = sshll.u32 %s4, 4
          %s426 = int_to_ptr.hbm [resolvable:$true] %s425
          %s427 = sshll.u32 [#allocation10], 4
          %s428 = int_to_ptr.vmem [resolvable:$true] %s427
          %433 = dma.hbm_to_vmem [thread:$0]  %s426, 512, %s428, [#allocation9], 128, 128, 8
        $region16: #{tpu_custom_call.1} parent=11 // pred_fallthru
          _
        // Predicated region
        $region17: #{tpu_custom_call.1} parent=11 // pred_check
          %p434 = pneg %p185
        $region18: #{tpu_custom_call.1} parent=11 // pred_check_branch
          %436 = sbr.rel (%p434) target = $region20
        $region19: #{tpu_custom_call.1} parent=11 // pred_region
          _
        $region20: #{tpu_custom_call.1} parent=11 // pred_fallthru
          _
        // Predicated region
        $region21: #{tpu_custom_call.1} parent=11 // pred_check
          %p437 = pneg %p206
        $region22: #{tpu_custom_call.1} parent=11 // pred_check_branch
          %439 = sbr.rel (%p437) target = $region24
        $region23: #{tpu_custom_call.1} parent=11 // pred_region
          %441 = vsyncadd [#allocation12], 0
          %s442 = sshll.u32 %s6, 4
          %s443 = int_to_ptr.hbm [resolvable:$true] %s442
          %s444 = sshll.u32 [#allocation11], 4
          %s445 = int_to_ptr.vmem [resolvable:$true] %s444
          %450 = dma.hbm_to_vmem [thread:$0]  %s443, 512, %s445, [#allocation12], 128, 128, 8
        $region24: #{tpu_custom_call.1} parent=11 // pred_fallthru
          _
        // Predicated region
        $region25: #{tpu_custom_call.1} parent=11 // pred_check
          %p451 = pneg %p227
        $region26: #{tpu_custom_call.1} parent=11 // pred_check_branch
          %453 = sbr.rel (%p451) target = $region28
        $region27: #{tpu_custom_call.1} parent=11 // pred_region
          _
        $region28: #{tpu_custom_call.1} parent=11 // pred_fallthru
          _
        // Predicated region
        $region29: #{tpu_custom_call.1} parent=11 // pred_check
          %p454 = pneg %p248
        $region30: #{tpu_custom_call.1} parent=11 // pred_check_branch
          %456 = sbr.rel (%p454) target = $region32
        $region31: #{tpu_custom_call.1} parent=11 // pred_region
          %458 = vsyncadd [#allocation12], 0
          %s459 = sshll.u32 %s8, 4
          %s460 = int_to_ptr.hbm [resolvable:$true] %s459
          %s461 = sshll.u32 [#allocation13], 4
          %s462 = int_to_ptr.vmem [resolvable:$true] %s461
          %467 = dma.hbm_to_vmem [thread:$0]  %s460, 512, %s462, [#allocation12], 128, 128, 8
        $region32: #{tpu_custom_call.1} parent=11 // pred_fallthru
          _
        // Predicated region
        $region33: #{tpu_custom_call.1} parent=11 // pred_check
          %p468 = pneg %p269
        $region34: #{tpu_custom_call.1} parent=11 // pred_check_branch
          %470 = sbr.rel (%p468) target = $region36
        $region35: #{tpu_custom_call.1} parent=11 // pred_region
          _
        $region36: #{tpu_custom_call.1} parent=11 // pred_fallthru
          _
        // Predicated region
        $region37: #{tpu_custom_call.1} parent=11 // pred_check
          %p471 = pneg %p290
        $region38: #{tpu_custom_call.1} parent=11 // pred_check_branch
          %473 = sbr.rel (%p471) target = $region40
        $region39: #{tpu_custom_call.1} parent=11 // pred_region
          %475 = vsyncadd [#allocation15], 0
          %s476 = sshll.u32 %s10, 4
          %s477 = int_to_ptr.hbm [resolvable:$true] %s476
          %s478 = sshll.u32 [#allocation14], 4
          %s479 = int_to_ptr.vmem [resolvable:$true] %s478
          %484 = dma.hbm_to_vmem [thread:$0]  %s477, 512, %s479, [#allocation15], 128, 128, 8
        $region40: #{tpu_custom_call.1} parent=11 // pred_fallthru
          _
        // Predicated region
        $region41: #{tpu_custom_call.1} parent=11 // pred_check
          %p485 = pneg %p311
        $region42: #{tpu_custom_call.1} parent=11 // pred_check_branch
          %487 = sbr.rel (%p485) target = $region44
        $region43: #{tpu_custom_call.1} parent=11 // pred_region
          _
        $region44: #{tpu_custom_call.1} parent=11 // pred_fallthru
          _
        // Predicated region
        $region45: #{tpu_custom_call.1} parent=11 // pred_check
          %p488 = pneg %p332
        $region46: #{tpu_custom_call.1} parent=11 // pred_check_branch
          %490 = sbr.rel (%p488) target = $region48
        $region47: #{tpu_custom_call.1} parent=11 // pred_region
          _
        $region48: #{tpu_custom_call.1} parent=11 // pred_fallthru
          _
        // Predicated region
        $region49: #{tpu_custom_call.1} parent=11 // pred_check
          %p491 = pneg %p353
        $region50: #{tpu_custom_call.1} parent=11 // pred_check_branch
          %493 = sbr.rel (%p491) target = $region52
        $region51: #{tpu_custom_call.1} parent=11 // pred_region
          _
        $region52: #{tpu_custom_call.1} parent=11 // pred_fallthru
          _
      $region12: #{tpu_custom_call.1} parent=5 // pred_fallthru
        _
      %p494 = scmp.lt.s32.totalorder %s39, 2
      // Predicated region
      $region53: #{tpu_custom_call.1} parent=5 // pred_check
        %p495 = pneg %p494
      $region54: #{tpu_custom_call.1} parent=5 // pred_check_branch
        %497 = sbr.rel (%p495) target = $region56
      $region55: #{tpu_custom_call.1} parent=5 // pred_region
        // Predicated region
        $region57: #{tpu_custom_call.1} parent=55 // pred_check
          %p498 = pneg %p59
        $region58: #{tpu_custom_call.1} parent=55 // pred_check_branch
          %500 = sbr.rel (%p498) target = $region60
        $region59: #{tpu_custom_call.1} parent=55 // pred_region
          %s501 = sand.u32 %s49, 1
          %s502 = scalar_lea.sflag [#allocation3], %s501
          %s503 = sand.u32 %s49, 1
          %s504 = smul.addr %s503, 8
          %s505 = scalar_lea.vmem [#allocation2], %s504
          %507 = vsyncadd %s502, 0
          %s508 = smul.addr %s39, 8
          %s509 = scalar_lea.hbm %s0, %s508
          %s511 = sshll.u32 %s509, 4
          %s512 = int_to_ptr.hbm [resolvable:$true] %s511
          %s513 = sshll.u32 %s505, 4
          %s514 = int_to_ptr.vmem [resolvable:$true] %s513
          %516 = dma.hbm_to_vmem [thread:$0]  %s512, 128, %s514, %s502
        $region60: #{tpu_custom_call.1} parent=55 // pred_fallthru
          _
        // Predicated region
        $region61: #{tpu_custom_call.1} parent=55 // pred_check
          %p517 = pneg %p85
        $region62: #{tpu_custom_call.1} parent=55 // pred_check_branch
          %519 = sbr.rel (%p517) target = $region64
        $region63: #{tpu_custom_call.1} parent=55 // pred_region
          %s520 = sand.u32 %s39, 1
          %s521 = scalar_lea.sflag [#allocation6], %s520
          %s522 = sand.u32 %s75, 1
          %s523 = smul.addr %s522, 8
          %s524 = scalar_lea.vmem [#allocation5], %s523
          %526 = vsyncadd %s521, 0
          %s527 = smul.addr %s39, 8
          %s528 = scalar_lea.hbm %s1, %s527
          %s530 = sshll.u32 %s528, 4
          %s531 = int_to_ptr.hbm [resolvable:$true] %s530
          %s532 = sshll.u32 %s524, 4
          %s533 = int_to_ptr.vmem [resolvable:$true] %s532
          %535 = dma.hbm_to_vmem [thread:$0]  %s531, 128, %s533, %s521
        $region64: #{tpu_custom_call.1} parent=55 // pred_fallthru
          _
        // Predicated region
        $region65: #{tpu_custom_call.1} parent=55 // pred_check
          %p536 = pneg %p111
        $region66: #{tpu_custom_call.1} parent=55 // pred_check_branch
          %538 = sbr.rel (%p536) target = $region68
        $region67: #{tpu_custom_call.1} parent=55 // pred_region
          %s539 = sand.u32 %s39, 1
          %s540 = scalar_lea.sflag [#allocation6], %s539
          %s541 = sand.u32 %s101, 1
          %s542 = smul.addr %s541, 8
          %s543 = scalar_lea.vmem [#allocation7], %s542
          %545 = vsyncadd %s540, 0
          %s546 = smul.addr %s39, 8
          %s547 = scalar_lea.hbm %s2, %s546
          %s549 = sshll.u32 %s547, 4
          %s550 = int_to_ptr.hbm [resolvable:$true] %s549
          %s551 = sshll.u32 %s543, 4
          %s552 = int_to_ptr.vmem [resolvable:$true] %s551
          %554 = dma.hbm_to_vmem [thread:$0]  %s550, 128, %s552, %s540
        $region68: #{tpu_custom_call.1} parent=55 // pred_fallthru
          _
        // Predicated region
        $region69: #{tpu_custom_call.1} parent=55 // pred_check
          %p555 = pneg %p137
        $region70: #{tpu_custom_call.1} parent=55 // pred_check_branch
          %557 = sbr.rel (%p555) target = $region72
        $region71: #{tpu_custom_call.1} parent=55 // pred_region
          %s558 = sand.u32 %s39, 1
          %s559 = scalar_lea.sflag [#allocation9], %s558
          %s560 = sand.u32 %s127, 1
          %s561 = smul.addr %s560, 8
          %s562 = scalar_lea.vmem [#allocation8], %s561
          %564 = vsyncadd %s559, 0
          %s565 = smul.addr %s39, 8
          %s566 = scalar_lea.hbm %s3, %s565
          %s568 = sshll.u32 %s566, 4
          %s569 = int_to_ptr.hbm [resolvable:$true] %s568
          %s570 = sshll.u32 %s562, 4
          %s571 = int_to_ptr.vmem [resolvable:$true] %s570
          %573 = dma.hbm_to_vmem [thread:$0]  %s569, 128, %s571, %s559
        $region72: #{tpu_custom_call.1} parent=55 // pred_fallthru
          _
      $region56: #{tpu_custom_call.1} parent=5 // pred_fallthru
        _
      %p574 = scmp.le.s32.totalorder 1, %s39
      %p575 = scmp.lt.s32.totalorder %s39, 3
      %p576 = pnand %p574, %p575
      %p577 = pneg %p576
      // Predicated region
      $region73: #{tpu_custom_call.1} parent=5 // pred_check
        _
      $region74: #{tpu_custom_call.1} parent=5 // pred_check_branch
        %579 = sbr.rel (%p576) target = $region76
      $region75: #{tpu_custom_call.1} parent=5 // pred_region
        %s580 = ssub.s32 %s39, 1
        %s581 = sand.u32 %s52, 1
        %s582 = scalar_lea.sflag [#allocation3], %s581
        %s583 = sand.u32 %s52, 1
        %s584 = smul.addr %s583, 8
        %s585 = scalar_lea.vmem [#allocation2], %s584
        // Predicated region
        $region77: #{tpu_custom_call.1} parent=75 // pred_check
          %p586 = pneg %p65
        $region78: #{tpu_custom_call.1} parent=75 // pred_check_branch
          %588 = sbr.rel (%p586) target = $region80
        $region79: #{tpu_custom_call.1} parent=75 // pred_region
          %590 = dma.done %s582, 128
        $region80: #{tpu_custom_call.1} parent=75 // pred_fallthru
          _
        %s591 = sand.u32 %s44, 1
        %s592 = scalar_lea.sflag [#allocation6], %s591
        %s593 = sand.u32 %s78, 1
        %s594 = smul.addr %s593, 8
        %s595 = scalar_lea.vmem [#allocation5], %s594
        // Predicated region
        $region81: #{tpu_custom_call.1} parent=75 // pred_check
          %p596 = pneg %p91
        $region82: #{tpu_custom_call.1} parent=75 // pred_check_branch
          %598 = sbr.rel (%p596) target = $region84
        $region83: #{tpu_custom_call.1} parent=75 // pred_region
          %600 = dma.done %s592, 128
        $region84: #{tpu_custom_call.1} parent=75 // pred_fallthru
          _
        %s601 = sand.u32 %s44, 1
        %s602 = scalar_lea.sflag [#allocation6], %s601
        %s603 = sand.u32 %s104, 1
        %s604 = smul.addr %s603, 8
        %s605 = scalar_lea.vmem [#allocation7], %s604
        // Predicated region
        $region85: #{tpu_custom_call.1} parent=75 // pred_check
          %p606 = pneg %p117
        $region86: #{tpu_custom_call.1} parent=75 // pred_check_branch
          %608 = sbr.rel (%p606) target = $region88
        $region87: #{tpu_custom_call.1} parent=75 // pred_region
          %610 = dma.done %s602, 128
        $region88: #{tpu_custom_call.1} parent=75 // pred_fallthru
          _
        %s611 = sand.u32 %s44, 1
        %s612 = scalar_lea.sflag [#allocation9], %s611
        %s613 = sand.u32 %s130, 1
        %s614 = smul.addr %s613, 8
        %s615 = scalar_lea.vmem [#allocation8], %s614
        // Predicated region
        $region89: #{tpu_custom_call.1} parent=75 // pred_check
          %p616 = pneg %p143
        $region90: #{tpu_custom_call.1} parent=75 // pred_check_branch
          %618 = sbr.rel (%p616) target = $region92
        $region91: #{tpu_custom_call.1} parent=75 // pred_region
          %620 = dma.done %s612, 128
        $region92: #{tpu_custom_call.1} parent=75 // pred_fallthru
          _
        // Predicated region
        $region93: #{tpu_custom_call.1} parent=75 // pred_check
          %p621 = pneg %p164
        $region94: #{tpu_custom_call.1} parent=75 // pred_check_branch
          %623 = sbr.rel (%p621) target = $region96
        $region95: #{tpu_custom_call.1} parent=75 // pred_region
          %625 = dma.done [#allocation9], 512
        $region96: #{tpu_custom_call.1} parent=75 // pred_fallthru
          _
        // Predicated region
        $region97: #{tpu_custom_call.1} parent=75 // pred_check
          %p626 = pneg %p206
        $region98: #{tpu_custom_call.1} parent=75 // pred_check_branch
          %628 = sbr.rel (%p626) target = $region100
        $region99: #{tpu_custom_call.1} parent=75 // pred_region
          %630 = dma.done [#allocation12], 512
        $region100: #{tpu_custom_call.1} parent=75 // pred_fallthru
          _
        // Predicated region
        $region101: #{tpu_custom_call.1} parent=75 // pred_check
          %p631 = pneg %p248
        $region102: #{tpu_custom_call.1} parent=75 // pred_check_branch
          %633 = sbr.rel (%p631) target = $region104
        $region103: #{tpu_custom_call.1} parent=75 // pred_region
          %635 = dma.done [#allocation12], 512
        $region104: #{tpu_custom_call.1} parent=75 // pred_fallthru
          _
        // Predicated region
        $region105: #{tpu_custom_call.1} parent=75 // pred_check
          %p636 = pneg %p290
        $region106: #{tpu_custom_call.1} parent=75 // pred_check_branch
          %638 = sbr.rel (%p636) target = $region108
        $region107: #{tpu_custom_call.1} parent=75 // pred_region
          %640 = dma.done [#allocation15], 512
        $region108: #{tpu_custom_call.1} parent=75 // pred_fallthru
          _
        %s641 = sand.u32 %s52, 1
        %s642 = scalar_lea.sflag [#allocation3], %s641
        %s643 = sand.u32 %s52, 1
        %s644 = smul.addr %s643, 8
        %s645 = scalar_lea.vmem [#allocation2], %s644
        %p646 = pneg %p65
        %p647 = pneg %p62
        %s648 = sand.u32 %s44, 1
        %s649 = scalar_lea.sflag [#allocation6], %s648
        %s650 = sand.u32 %s78, 1
        %s651 = smul.addr %s650, 8
        %s652 = scalar_lea.vmem [#allocation5], %s651
        %p653 = pneg %p91
        %p654 = pneg %p88
        %s655 = sand.u32 %s44, 1
        %s656 = scalar_lea.sflag [#allocation6], %s655
        %s657 = sand.u32 %s104, 1
        %s658 = smul.addr %s657, 8
        %s659 = scalar_lea.vmem [#allocation7], %s658
        %p660 = pneg %p117
        %p661 = pneg %p114
        %s662 = sand.u32 %s44, 1
        %s663 = scalar_lea.sflag [#allocation9], %s662
        %s664 = sand.u32 %s130, 1
        %s665 = smul.addr %s664, 8
        %s666 = scalar_lea.vmem [#allocation8], %s665
        %p667 = pneg %p143
        %p668 = pneg %p140
        %p669 = pneg %p164
        %p670 = pneg %p161
        %p671 = pneg %p185
        %p672 = pneg %p182
        %p673 = pneg %p206
        %p674 = pneg %p203
        %p675 = pneg %p227
        %p676 = pneg %p224
        %p677 = pneg %p248
        %p678 = pneg %p245
        %p679 = pneg %p269
        %p680 = pneg %p266
        %p681 = pneg %p290
        %p682 = pneg %p287
        %p683 = pneg %p311
        %p684 = pneg %p308
        %p685 = pneg %p332
        %p686 = pneg %p329
        %p687 = pneg %p353
        %p688 = pneg %p350
        %p689 = pneg %p379
        %p690 = pneg %p376
        %s691 = sand.u32 %s366, 1
        %s692 = scalar_lea.sflag [#allocation4], %s691
        %s693 = sand.u32 %s366, 1
        %s694 = smul.addr %s693, 8
        %s695 = scalar_lea.vmem [#allocation16], %s694
        %p696 = pneg %p405
        %p697 = pneg %p402
        %s698 = sand.u32 %s392, 1
        %s699 = scalar_lea.sflag [#allocation18], %s698
        %s700 = sand.u32 %s392, 1
        %s701 = smul.addr %s700, 32
        %s702 = scalar_lea.vmem [#allocation17], %s701
        %v703 = vld [vmem:[%s585] sm:$0xff]
        %v704 = vld [vmem:[%s595] sm:$0xff]
        %v705 = vld [vmem:[%s605] sm:$0xff]
        %v706 = vld [vmem:[%s615] sm:$0xff]
        %vm707 = vcmp.ne.s32.totalorder %v706, 0
        %v708 = vld [vmem:[#allocation10] sm:$0xff]
        %v709 = vld [vmem:[#allocation10 + $0x8] sm:$0xff]
        %v710 = vld [vmem:[#allocation10 + $0x10] sm:$0xff]
        %v711 = vld [vmem:[#allocation10 + $0x18] sm:$0xff]
        %v712 = vld [vmem:[%s5] sm:$0x1]
        %v714 = vperm.slane %v712, 0
        %vm716 = vcmask 261120
        %v718 = vsel %vm716, %v703, 0
        %720 = vmatpush.msra.mxu0 0.0
        %721 = vmatpush.msra.mxu0 0.0
        %722 = vmatpush.msra.mxu0 0.0
        %723 = vmatpush.msra.mxu0 0.0
        %724 = vmatpush.msra.mxu0 0.0
        %725 = vmatpush.msra.mxu0 0.0
        %726 = vmatpush.msra.mxu0 0.0
        %727 = vmatpush.msra.mxu0 0.0
        %728 = vmatpush.msra.mxu0 0.0
        %729 = vmatpush.msra.mxu0 0.0
        %730 = vmatpush.msra.mxu0 0.0
        %731 = vmatpush.msra.mxu0 0.0
        %732 = vmatpush.msra.mxu0 %v711
        %733 = vmatpush.msra.mxu0 %v710
        %734 = vmatpush.msra.mxu0 %v709
        %735 = vmatpush.msra.mxu0 %v708
        %736 = vmatmul.f32.gmra.mxu0 %v718
        %v737 = vpop.f32.mrf.mxu0
        %v738 = vadd.f32 %v714, %v737
        %739 = vdwg.mxu0
        %v740 = vmul.f32 %v738, 0.35355338
        %v741 = vld [vmem:[#allocation11] sm:$0xff]
        %v742 = vld [vmem:[#allocation11 + $0x8] sm:$0xff]
        %v743 = vld [vmem:[#allocation11 + $0x10] sm:$0xff]
        %v744 = vld [vmem:[#allocation11 + $0x18] sm:$0xff]
        %v745 = vld [vmem:[%s7] sm:$0x1]
        %v747 = vperm.slane %v745, 0
        %v750 = vsel %vm716, %v704, 0
        %752 = vmatpush.msra.mxu0 0.0
        %753 = vmatpush.msra.mxu0 0.0
        %754 = vmatpush.msra.mxu0 0.0
        %755 = vmatpush.msra.mxu0 0.0
        %756 = vmatpush.msra.mxu0 0.0
        %757 = vmatpush.msra.mxu0 0.0
        %758 = vmatpush.msra.mxu0 0.0
        %759 = vmatpush.msra.mxu0 0.0
        %760 = vmatpush.msra.mxu0 0.0
        %761 = vmatpush.msra.mxu0 0.0
        %762 = vmatpush.msra.mxu0 0.0
        %763 = vmatpush.msra.mxu0 0.0
        %764 = vmatpush.msra.mxu0 %v744
        %765 = vmatpush.msra.mxu0 %v743
        %766 = vmatpush.msra.mxu0 %v742
        %767 = vmatpush.msra.mxu0 %v741
        %768 = vmatmul.f32.gmra.mxu0 %v750
        %v769 = vpop.f32.mrf.mxu0
        %v770 = vadd.f32 %v747, %v769
        %771 = vdwg.mxu0
        %v772 = vld [vmem:[#allocation13] sm:$0xff]
        %v773 = vld [vmem:[#allocation13 + $0x8] sm:$0xff]
        %v774 = vld [vmem:[#allocation13 + $0x10] sm:$0xff]
        %v775 = vld [vmem:[#allocation13 + $0x18] sm:$0xff]
        %v776 = vld [vmem:[%s9] sm:$0x1]
        %v778 = vperm.slane %v776, 0
        %v781 = vsel %vm716, %v705, 0
        %783 = vmatpush.msra.mxu0 0.0
        %784 = vmatpush.msra.mxu0 0.0
        %785 = vmatpush.msra.mxu0 0.0
        %786 = vmatpush.msra.mxu0 0.0
        %787 = vmatpush.msra.mxu0 0.0
        %788 = vmatpush.msra.mxu0 0.0
        %789 = vmatpush.msra.mxu0 0.0
        %790 = vmatpush.msra.mxu0 0.0
        %791 = vmatpush.msra.mxu0 0.0
        %792 = vmatpush.msra.mxu0 0.0
        %793 = vmatpush.msra.mxu0 0.0
        %794 = vmatpush.msra.mxu0 0.0
        %795 = vmatpush.msra.mxu0 %v775
        %796 = vmatpush.msra.mxu0 %v774
        %797 = vmatpush.msra.mxu0 %v773
        %798 = vmatpush.msra.mxu0 %v772
        %799 = vmatmul.f32.gmra.mxu0 %v781
        %v800 = vpop.f32.mrf.mxu0
        %v801 = vadd.f32 %v778, %v800
        %802 = vdwg.mxu0
        %vm803 = vcmask 64512
        %v805 = vsel %vm803, %v740, 0
        %v808 = vsel %vm803, %v770, 0
        %810 = vmatpush.xpose.msra.mxu0 0.0
        %811 = vmatpush.xpose.msra.mxu0 0.0
        %812 = vmatpush.xpose.msra.mxu0 0.0
        %813 = vmatpush.xpose.msra.mxu0 0.0
        %814 = vmatpush.xpose.msra.mxu0 0.0
        %815 = vmatpush.xpose.msra.mxu0 0.0
        %816 = vmatpush.xpose.msra.mxu0 0.0
        %817 = vmatpush.xpose.msra.mxu0 0.0
        %818 = vmatpush.xpose.msra.mxu0 0.0
        %819 = vmatpush.xpose.msra.mxu0 0.0
        %820 = vmatpush.xpose.msra.mxu0 0.0
        %821 = vmatpush.xpose.msra.mxu0 0.0
        %822 = vmatpush.xpose.msra.mxu0 0.0
        %823 = vmatpush.xpose.msra.mxu0 0.0
        %824 = vmatpush.xpose.msra.mxu0 0.0
        %825 = vmatpush.xpose.msra.mxu0 %v808
        %826 = vmatmul.f32.gmra.mxu0 %v805
        %v827 = vpop.f32.mrf.mxu0
        %v828 = vadd.f32 0.0, %v827
        %829 = vdwg.mxu0
        %v830 = vsel %vm707, -1e+09, %v828
        %v831 = vsel %vm803, %v830, -inf
        %832 = vmax.xlane.f32.xlu0 %v831
        %v833 = vpop.xlane.xlu0 %832
        %v834 = vsub.f32 %v830, %v833
        %v835 = vmul.f32 %v834, 1.442695
        %v836 = vpow.pop %v835
        %v837 = vsel %vm803, %v836, 0.0
        %838 = vadd.xlane.f32.xlu0 %v837
        %v839 = vpop.xlane.xlu0 %838
        %v840 = vrcp.pop %v839
        %v841 = vmul.f32 %v839, %v840
        %v842 = vsub.f32 1.0, %v841
        %v843 = vmul.f32 %v840, %v842
        %v844 = vadd.f32 %v840, %v843
        %vm845 = vweird.f32 %v839
        %vm846 = vweird.f32 %v840
        %vm847 = vmor %vm845, %vm846
        %v848 = vsel %vm847, %v840, %v844
        %v849 = vand.u32 2147483647, %v839
        %vm850 = vcmp.eq.f32.partialorder %v849, 8.507059e+37
        %v851 = vand.u32 %v839, 2147483648
        %v852 = vor.u32 1.1754944e-38, %v851
        %v853 = vsel %vm850, %v852, %v848
        %v854 = vmul.f32 %v836, %v853
        %855 = vst.msk [vmem:[%s702] sm:$0xff] %vm803, %v854
        %v857 = vsel %vm803, %v854, 0
        %859 = vmatpush.msra.mxu0 0.0
        %860 = vmatpush.msra.mxu0 0.0
        %861 = vmatpush.msra.mxu0 0.0
        %862 = vmatpush.msra.mxu0 0.0
        %863 = vmatpush.msra.mxu0 0.0
        %864 = vmatpush.msra.mxu0 0.0
        %865 = vmatpush.msra.mxu0 0.0
        %866 = vmatpush.msra.mxu0 0.0
        %867 = vmatpush.msra.mxu0 0.0
        %868 = vmatpush.msra.mxu0 0.0
        %869 = vmatpush.msra.mxu0 0.0
        %870 = vmatpush.msra.mxu0 0.0
        %871 = vmatpush.msra.mxu0 0.0
        %872 = vmatpush.msra.mxu0 0.0
        %873 = vmatpush.msra.mxu0 0.0
        %874 = vmatpush.msra.mxu0 %v801
        %875 = vmatmul.f32.gmra.mxu0 %v857
        %v876 = vpop.f32.mrf.mxu0
        %v877 = vadd.f32 0.0, %v876
        %878 = vdwg.mxu0
        %879 = vrot.lane.b32.xlu0 %v740, 120
        %v880 = vpop.permute.xlu0 %879
        %881 = vrot.lane.b32.xlu0 %v770, 120
        %v882 = vpop.permute.xlu0 %881
        %v883 = vsel %vm803, %v880, 0
        %v885 = vsel %vm803, %v882, 0
        %887 = vmatpush.xpose.msra.mxu0 0.0
        %888 = vmatpush.xpose.msra.mxu0 0.0
        %889 = vmatpush.xpose.msra.mxu0 0.0
        %890 = vmatpush.xpose.msra.mxu0 0.0
        %891 = vmatpush.xpose.msra.mxu0 0.0
        %892 = vmatpush.xpose.msra.mxu0 0.0
        %893 = vmatpush.xpose.msra.mxu0 0.0
        %894 = vmatpush.xpose.msra.mxu0 0.0
        %895 = vmatpush.xpose.msra.mxu0 0.0
        %896 = vmatpush.xpose.msra.mxu0 0.0
        %897 = vmatpush.xpose.msra.mxu0 0.0
        %898 = vmatpush.xpose.msra.mxu0 0.0
        %899 = vmatpush.xpose.msra.mxu0 0.0
        %900 = vmatpush.xpose.msra.mxu0 0.0
        %901 = vmatpush.xpose.msra.mxu0 0.0
        %902 = vmatpush.xpose.msra.mxu0 %v885
        %903 = vmatmul.f32.gmra.mxu0 %v883
        %v904 = vpop.f32.mrf.mxu0
        %v905 = vadd.f32 0.0, %v904
        %906 = vdwg.mxu0
        %v907 = vsel %vm707, -1e+09, %v905
        %v908 = vsel %vm803, %v907, -inf
        %909 = vmax.xlane.f32.xlu0 %v908
        %v910 = vpop.xlane.xlu0 %909
        %v911 = vsub.f32 %v907, %v910
        %v912 = vmul.f32 %v911, 1.442695
        %v913 = vpow.pop %v912
        %v914 = vsel %vm803, %v913, 0.0
        %915 = vadd.xlane.f32.xlu0 %v914
        %v916 = vpop.xlane.xlu0 %915
        %v917 = vrcp.pop %v916
        %v918 = vmul.f32 %v916, %v917
        %v919 = vsub.f32 1.0, %v918
        %v920 = vmul.f32 %v917, %v919
        %v921 = vadd.f32 %v917, %v920
        %vm922 = vweird.f32 %v916
        %vm923 = vweird.f32 %v917
        %vm924 = vmor %vm922, %vm923
        %v925 = vsel %vm924, %v917, %v921
        %v926 = vand.u32 2147483647, %v916
        %vm927 = vcmp.eq.f32.partialorder %v926, 8.507059e+37
        %v928 = vand.u32 %v916, 2147483648
        %v929 = vor.u32 1.1754944e-38, %v928
        %v930 = vsel %vm927, %v929, %v925
        %v931 = vmul.f32 %v913, %v930
        %s932 = scalar_lea.vmem %s702, 8 [#allocation17]
        %933 = vst.msk [vmem:[%s932] sm:$0xff] %vm803, %v931
        %935 = vrot.lane.b32.xlu0 %v801, 120
        %v936 = vpop.permute.xlu0 %935
        %v939 = vsel %vm803, %v931, 0
        %941 = vmatpush.msra.mxu0 0.0
        %942 = vmatpush.msra.mxu0 0.0
        %943 = vmatpush.msra.mxu0 0.0
        %944 = vmatpush.msra.mxu0 0.0
        %945 = vmatpush.msra.mxu0 0.0
        %946 = vmatpush.msra.mxu0 0.0
        %947 = vmatpush.msra.mxu0 0.0
        %948 = vmatpush.msra.mxu0 0.0
        %949 = vmatpush.msra.mxu0 0.0
        %950 = vmatpush.msra.mxu0 0.0
        %951 = vmatpush.msra.mxu0 0.0
        %952 = vmatpush.msra.mxu0 0.0
        %953 = vmatpush.msra.mxu0 0.0
        %954 = vmatpush.msra.mxu0 0.0
        %955 = vmatpush.msra.mxu0 0.0
        %956 = vmatpush.msra.mxu0 %v936
        %957 = vmatmul.f32.gmra.mxu0 %v939
        %v958 = vpop.f32.mrf.mxu0
        %v959 = vadd.f32 0.0, %v958
        %960 = vdwg.mxu0
        %961 = vrot.lane.b32.xlu0 %v740, 112
        %v962 = vpop.permute.xlu0 %961
        %963 = vrot.lane.b32.xlu0 %v770, 112
        %v964 = vpop.permute.xlu0 %963
        %v965 = vsel %vm803, %v962, 0
        %v967 = vsel %vm803, %v964, 0
        %969 = vmatpush.xpose.msra.mxu0 0.0
        %970 = vmatpush.xpose.msra.mxu0 0.0
        %971 = vmatpush.xpose.msra.mxu0 0.0
        %972 = vmatpush.xpose.msra.mxu0 0.0
        %973 = vmatpush.xpose.msra.mxu0 0.0
        %974 = vmatpush.xpose.msra.mxu0 0.0
        %975 = vmatpush.xpose.msra.mxu0 0.0
        %976 = vmatpush.xpose.msra.mxu0 0.0
        %977 = vmatpush.xpose.msra.mxu0 0.0
        %978 = vmatpush.xpose.msra.mxu0 0.0
        %979 = vmatpush.xpose.msra.mxu0 0.0
        %980 = vmatpush.xpose.msra.mxu0 0.0
        %981 = vmatpush.xpose.msra.mxu0 0.0
        %982 = vmatpush.xpose.msra.mxu0 0.0
        %983 = vmatpush.xpose.msra.mxu0 0.0
        %984 = vmatpush.xpose.msra.mxu0 %v967
        %985 = vmatmul.f32.gmra.mxu0 %v965
        %v986 = vpop.f32.mrf.mxu0
        %v987 = vadd.f32 0.0, %v986
        %988 = vdwg.mxu0
        %v989 = vsel %vm707, -1e+09, %v987
        %v990 = vsel %vm803, %v989, -inf
        %991 = vmax.xlane.f32.xlu0 %v990
        %v992 = vpop.xlane.xlu0 %991
        %v993 = vsub.f32 %v989, %v992
        %v994 = vmul.f32 %v993, 1.442695
        %v995 = vpow.pop %v994
        %v996 = vsel %vm803, %v995, 0.0
        %997 = vadd.xlane.f32.xlu0 %v996
        %v998 = vpop.xlane.xlu0 %997
        %v999 = vrcp.pop %v998
        %v1000 = vmul.f32 %v998, %v999
        %v1001 = vsub.f32 1.0, %v1000
        %v1002 = vmul.f32 %v999, %v1001
        %v1003 = vadd.f32 %v999, %v1002
        %vm1004 = vweird.f32 %v998
        %vm1005 = vweird.f32 %v999
        %vm1006 = vmor %vm1004, %vm1005
        %v1007 = vsel %vm1006, %v999, %v1003
        %v1008 = vand.u32 2147483647, %v998
        %vm1009 = vcmp.eq.f32.partialorder %v1008, 8.507059e+37
        %v1010 = vand.u32 %v998, 2147483648
        %v1011 = vor.u32 1.1754944e-38, %v1010
        %v1012 = vsel %vm1009, %v1011, %v1007
        %v1013 = vmul.f32 %v995, %v1012
        %s1014 = scalar_lea.vmem %s702, 16 [#allocation17]
        %1015 = vst.msk [vmem:[%s1014] sm:$0xff] %vm803, %v1013
        %1016 = vrot.lane.b32.xlu0 %v801, 112
        %v1017 = vpop.permute.xlu0 %1016
        %v1020 = vsel %vm803, %v1013, 0
        %1022 = vmatpush.msra.mxu0 0.0
        %1023 = vmatpush.msra.mxu0 0.0
        %1024 = vmatpush.msra.mxu0 0.0
        %1025 = vmatpush.msra.mxu0 0.0
        %1026 = vmatpush.msra.mxu0 0.0
        %1027 = vmatpush.msra.mxu0 0.0
        %1028 = vmatpush.msra.mxu0 0.0
        %1029 = vmatpush.msra.mxu0 0.0
        %1030 = vmatpush.msra.mxu0 0.0
        %1031 = vmatpush.msra.mxu0 0.0
        %1032 = vmatpush.msra.mxu0 0.0
        %1033 = vmatpush.msra.mxu0 0.0
        %1034 = vmatpush.msra.mxu0 0.0
        %1035 = vmatpush.msra.mxu0 0.0
        %1036 = vmatpush.msra.mxu0 0.0
        %1037 = vmatpush.msra.mxu0 %v1017
        %1038 = vmatmul.f32.gmra.mxu0 %v1020
        %v1039 = vpop.f32.mrf.mxu0
        %v1040 = vadd.f32 0.0, %v1039
        %1041 = vdwg.mxu0
        %1042 = vrot.lane.b32.xlu0 %v740, 104
        %v1043 = vpop.permute.xlu0 %1042
        %1044 = vrot.lane.b32.xlu0 %v770, 104
        %v1045 = vpop.permute.xlu0 %1044
        %v1046 = vsel %vm803, %v1043, 0
        %v1048 = vsel %vm803, %v1045, 0
        %1050 = vmatpush.xpose.msra.mxu0 0.0
        %1051 = vmatpush.xpose.msra.mxu0 0.0
        %1052 = vmatpush.xpose.msra.mxu0 0.0
        %1053 = vmatpush.xpose.msra.mxu0 0.0
        %1054 = vmatpush.xpose.msra.mxu0 0.0
        %1055 = vmatpush.xpose.msra.mxu0 0.0
        %1056 = vmatpush.xpose.msra.mxu0 0.0
        %1057 = vmatpush.xpose.msra.mxu0 0.0
        %1058 = vmatpush.xpose.msra.mxu0 0.0
        %1059 = vmatpush.xpose.msra.mxu0 0.0
        %1060 = vmatpush.xpose.msra.mxu0 0.0
        %1061 = vmatpush.xpose.msra.mxu0 0.0
        %1062 = vmatpush.xpose.msra.mxu0 0.0
        %1063 = vmatpush.xpose.msra.mxu0 0.0
        %1064 = vmatpush.xpose.msra.mxu0 0.0
        %1065 = vmatpush.xpose.msra.mxu0 %v1048
        %1066 = vmatmul.f32.gmra.mxu0 %v1046
        %v1067 = vpop.f32.mrf.mxu0
        %v1068 = vadd.f32 0.0, %v1067
        %1069 = vdwg.mxu0
        %v1070 = vsel %vm707, -1e+09, %v1068
        %v1071 = vsel %vm803, %v1070, -inf
        %1072 = vmax.xlane.f32.xlu0 %v1071
        %v1073 = vpop.xlane.xlu0 %1072
        %v1074 = vsub.f32 %v1070, %v1073
        %v1075 = vmul.f32 %v1074, 1.442695
        %v1076 = vpow.pop %v1075
        %v1077 = vsel %vm803, %v1076, 0.0
        %1078 = vadd.xlane.f32.xlu0 %v1077
        %v1079 = vpop.xlane.xlu0 %1078
        %v1080 = vrcp.pop %v1079
        %v1081 = vmul.f32 %v1079, %v1080
        %v1082 = vsub.f32 1.0, %v1081
        %v1083 = vmul.f32 %v1080, %v1082
        %v1084 = vadd.f32 %v1080, %v1083
        %vm1085 = vweird.f32 %v1079
        %vm1086 = vweird.f32 %v1080
        %vm1087 = vmor %vm1085, %vm1086
        %v1088 = vsel %vm1087, %v1080, %v1084
        %v1089 = vand.u32 2147483647, %v1079
        %vm1090 = vcmp.eq.f32.partialorder %v1089, 8.507059e+37
        %v1091 = vand.u32 %v1079, 2147483648
        %v1092 = vor.u32 1.1754944e-38, %v1091
        %v1093 = vsel %vm1090, %v1092, %v1088
        %v1094 = vmul.f32 %v1076, %v1093
        %s1095 = scalar_lea.vmem %s702, 24 [#allocation17]
        %1096 = vst.msk [vmem:[%s1095] sm:$0xff] %vm803, %v1094
        %1097 = vrot.lane.b32.xlu0 %v801, 104
        %v1098 = vpop.permute.xlu0 %1097
        %v1101 = vsel %vm803, %v1094, 0
        %1103 = vmatpush.msra.mxu0 0.0
        %1104 = vmatpush.msra.mxu0 0.0
        %1105 = vmatpush.msra.mxu0 0.0
        %1106 = vmatpush.msra.mxu0 0.0
        %1107 = vmatpush.msra.mxu0 0.0
        %1108 = vmatpush.msra.mxu0 0.0
        %1109 = vmatpush.msra.mxu0 0.0
        %1110 = vmatpush.msra.mxu0 0.0
        %1111 = vmatpush.msra.mxu0 0.0
        %1112 = vmatpush.msra.mxu0 0.0
        %1113 = vmatpush.msra.mxu0 0.0
        %1114 = vmatpush.msra.mxu0 0.0
        %1115 = vmatpush.msra.mxu0 0.0
        %1116 = vmatpush.msra.mxu0 0.0
        %1117 = vmatpush.msra.mxu0 0.0
        %1118 = vmatpush.msra.mxu0 %v1098
        %1119 = vmatmul.f32.gmra.mxu0 %v1101
        %v1120 = vpop.f32.mrf.mxu0
        %v1121 = vadd.f32 0.0, %v1120
        %1122 = vdwg.mxu0
        %1124 = vrot.lane.b32.xlu0 %v959, 8
        %v1125 = vpop.permute.xlu0 %1124
        %1128 = vrot.lane.b32.xlu0 %v1040, 16
        %v1129 = vpop.permute.xlu0 %1128
        %1132 = vrot.lane.b32.xlu0 %v1121, 24
        %v1133 = vpop.permute.xlu0 %1132
        %v1135 = vsel %vm803, %v877, %v1125
        %vm1136 = vcmask 130048
        %v1137 = vsel %vm1136, %v1135, %v1129
        %vm1138 = vcmask 195584
        %v1139 = vsel %vm1138, %v1137, %v1133
        %v1140 = vld [vmem:[#allocation14] sm:$0xff]
        %v1141 = vld [vmem:[#allocation14 + $0x8] sm:$0xff]
        %v1142 = vld [vmem:[#allocation14 + $0x10] sm:$0xff]
        %v1143 = vld [vmem:[#allocation14 + $0x18] sm:$0xff]
        %v1144 = vld [vmem:[%s11] sm:$0x1]
        %v1146 = vperm.slane %v1144, 0
        %v1149 = vsel %vm716, %v1139, 0
        %1151 = vmatpush.msra.mxu0 0.0
        %1152 = vmatpush.msra.mxu0 0.0
        %1153 = vmatpush.msra.mxu0 0.0
        %1154 = vmatpush.msra.mxu0 0.0
        %1155 = vmatpush.msra.mxu0 0.0
        %1156 = vmatpush.msra.mxu0 0.0
        %1157 = vmatpush.msra.mxu0 0.0
        %1158 = vmatpush.msra.mxu0 0.0
        %1159 = vmatpush.msra.mxu0 0.0
        %1160 = vmatpush.msra.mxu0 0.0
        %1161 = vmatpush.msra.mxu0 0.0
        %1162 = vmatpush.msra.mxu0 0.0
        %1163 = vmatpush.msra.mxu0 %v1143
        %1164 = vmatpush.msra.mxu0 %v1142
        %1165 = vmatpush.msra.mxu0 %v1141
        %1166 = vmatpush.msra.mxu0 %v1140
        %1167 = vmatmul.f32.gmra.mxu0 %v1149
        %v1168 = vpop.f32.mrf.mxu0
        %v1169 = vadd.f32 %v1146, %v1168
        %1170 = vdwg.mxu0
        %v1171 = vadd.f32 %v1169, %v703
        %v1172 = vsel %vm716, %v1171, 0.0
        %1173 = vadd.xlane.f32.xlu0 %v1172
        %v1174 = vpop.xlane.xlu0 %1173
        %v1175 = vrcp.pop 32.0
        %v1176 = vmul.f32 32.0, %v1175
        %v1177 = vsub.f32 1.0, %v1176
        %v1178 = vmul.f32 %v1175, %v1177
        %v1179 = vadd.f32 %v1175, %v1178
        %vm1180 = vweird.f32 %v1175
        %v1181 = vsel %vm1180, %v1175, %v1179
        %v1182 = vmul.f32 %v1174, %v1181
        %v1183 = vsub.f32 %v1171, %v1182
        %v1184 = vmul.f32 %v1183, %v1183
        %v1185 = vsel %vm716, %v1184, 0.0
        %1186 = vadd.xlane.f32.xlu0 %v1185
        %v1187 = vpop.xlane.xlu0 %1186
        %v1188 = vmul.f32 %v1187, %v1181
        %v1189 = vadd.f32 %v1188, 1e-05
        %v1190 = vrsqrt.pop %v1189
        %v1191 = vmul.f32 %v1190, %v1189
        %v1192 = vmul.f32 %v1191, %v1190
        %v1193 = vmul.f32 0.5, %v1192
        %v1194 = vsub.f32 1.5, %v1193
        %v1195 = vmul.f32 %v1190, %v1194
        %vm1196 = vweird.f32 %v1189
        %vm1197 = vweird.f32 %v1190
        %vm1198 = vmor %vm1196, %vm1197
        %v1199 = vsel %vm1198, %v1190, %v1195
        %v1200 = vmul.f32 %v1183, %v1199
        %v1201 = vld [vmem:[%s12] sm:$0x1]
        %v1203 = vperm.slane %v1201, 0
        %v1205 = vmul.f32 %v1200, %v1203
        %v1206 = vld [vmem:[%s13] sm:$0x1]
        %v1208 = vperm.slane %v1206, 0
        %v1210 = vadd.f32 %v1205, %v1208
        %1211 = vst.msk [vmem:[%s695] sm:$0xff] %vm716, %v1210
        %s1212 = sand.u32 %s366, 1
        %s1213 = scalar_lea.sflag [#allocation4], %s1212
        %s1214 = sand.u32 %s366, 1
        %s1215 = smul.addr %s1214, 8
        %s1216 = scalar_lea.vmem [#allocation16], %s1215
        %s1217 = sand.u32 %s392, 1
        %s1218 = scalar_lea.sflag [#allocation18], %s1217
        %s1219 = sand.u32 %s392, 1
        %s1220 = smul.addr %s1219, 32
        %s1221 = scalar_lea.vmem [#allocation17], %s1220
        // Predicated region
        $region109: #{tpu_custom_call.1} parent=75 // pred_check
          %p1222 = pneg %p376
        $region110: #{tpu_custom_call.1} parent=75 // pred_check_branch
          %1224 = sbr.rel (%p1222) target = $region112
        $region111: #{tpu_custom_call.1} parent=75 // pred_region
          %1226 = vsyncadd %s1213, 0
          %s1227 = smul.addr %s44, 8
          %s1228 = scalar_lea.hbm %s14, %s1227
          %s1230 = sshll.u32 %s1216, 4
          %s1231 = int_to_ptr.vmem [resolvable:$true] %s1230
          %s1232 = sshll.u32 %s1228, 4
          %s1233 = int_to_ptr.hbm [resolvable:$true] %s1232
          %1235 = dma.vmem_to_hbm [thread:$0]  %s1231, 128, %s1233, %s1213
        $region112: #{tpu_custom_call.1} parent=75 // pred_fallthru
          _
        // Predicated region
        $region113: #{tpu_custom_call.1} parent=75 // pred_check
          %p1236 = pneg %p402
        $region114: #{tpu_custom_call.1} parent=75 // pred_check_branch
          %1238 = sbr.rel (%p1236) target = $region116
        $region115: #{tpu_custom_call.1} parent=75 // pred_region
          %1240 = vsyncadd %s1218, 0
          %s1241 = smul.addr %s44, 4
          %s1242 = smul.addr %s1241, 8
          %s1243 = scalar_lea.hbm %s15, %s1242
          %s1244 = sshll.u32 %s1221, 4
          %s1245 = int_to_ptr.vmem [resolvable:$true] %s1244
          %s1246 = sshll.u32 %s1243, 4
          %s1247 = int_to_ptr.hbm [resolvable:$true] %s1246
          %1252 = dma.vmem_to_hbm [thread:$0]  %s1245, 512, %s1247, %s1218, 128, 128, 8
        $region116: #{tpu_custom_call.1} parent=75 // pred_fallthru
          _
      $region76: #{tpu_custom_call.1} parent=5 // pred_fallthru
        _
      %p1253 = scmp.le.s32.totalorder 2, %s39
      // Predicated region
      $region117: #{tpu_custom_call.1} parent=5 // pred_check
        %p1254 = pneg %p1253
      $region118: #{tpu_custom_call.1} parent=5 // pred_check_branch
        %1256 = sbr.rel (%p1254) target = $region120
      $region119: #{tpu_custom_call.1} parent=5 // pred_region
        %s1257 = ssub.s32 %s39, 2
        // Predicated region
        $region121: #{tpu_custom_call.1} parent=119 // pred_check
          %p1258 = pneg %p382
        $region122: #{tpu_custom_call.1} parent=119 // pred_check_branch
          %1260 = sbr.rel (%p1258) target = $region124
        $region123: #{tpu_custom_call.1} parent=119 // pred_region
          %s1261 = sand.u32 %s367, 1
          %s1262 = scalar_lea.sflag [#allocation4], %s1261
          %s1263 = sand.u32 %s367, 1
          %s1264 = smul.addr %s1263, 8
          %s1265 = scalar_lea.vmem [#allocation16], %s1264
          %1267 = dma.done %s1262, 128
        $region124: #{tpu_custom_call.1} parent=119 // pred_fallthru
          _
        // Predicated region
        $region125: #{tpu_custom_call.1} parent=119 // pred_check
          %p1268 = pneg %p408
        $region126: #{tpu_custom_call.1} parent=119 // pred_check_branch
          %1270 = sbr.rel (%p1268) target = $region128
        $region127: #{tpu_custom_call.1} parent=119 // pred_region
          %s1271 = sand.u32 %s393, 1
          %s1272 = scalar_lea.sflag [#allocation18], %s1271
          %s1273 = sand.u32 %s393, 1
          %s1274 = smul.addr %s1273, 32
          %s1275 = scalar_lea.vmem [#allocation17], %s1274
          %1277 = dma.done %s1272, 512
        $region128: #{tpu_custom_call.1} parent=119 // pred_fallthru
          _
      $region120: #{tpu_custom_call.1} parent=5 // pred_fallthru
        _
    $region6: #{tpu_custom_call.1} parent=1 // loop_footer
      %s43 = sadd.s32 1, %s39
    $region7: #{tpu_custom_call.1} parent=1 // loop_footer_branch
      %38 = sbr.rel target = $region3
    $region8: #{tpu_custom_call.1} parent=1 // loop_exit
      _
    %1278 = vsyncpa [#allocation3], 1
    %s1279 = scalar_lea.sflag [#allocation3], 1
    %1280 = vsyncpa %s1279, 1
    %1281 = vsyncpa [#allocation6], 1
    %s1282 = scalar_lea.sflag [#allocation6], 1
    %1283 = vsyncpa %s1282, 1
    %1284 = vsyncpa [#allocation9], 1
    %s1285 = scalar_lea.sflag [#allocation9], 1
    %1286 = vsyncpa %s1285, 1
    %1287 = vsyncpa [#allocation12], 1
    %1288 = vsyncpa [#allocation15], 1
    %1289 = vsyncpa [#allocation4], 1
    %s1290 = scalar_lea.sflag [#allocation4], 1
    %1291 = vsyncpa %s1290, 1
    %1292 = vsyncpa [#allocation18], 1
    %s1293 = scalar_lea.sflag [#allocation18], 1
    %1294 = vsyncpa %s1293, 1

</llo_original>
